<compile_context>
chip_gen: v6e
topology: v6e:2x2x1
jax: 0.10.0
libtpu: 0.0.40
codegen_flags: <defaults>
</compile_context>

<pallas_src>
import functools

import jax
import jax.numpy as jnp
from jax.experimental import pallas as pl
from jax.experimental.pallas import tpu as pltpu

EPS = 1e-5
SUBLANE = 8          # f32 sublane granularity for the batch (second-to-last) axis
MAX_TM = 1024        # batch-tile cap (1024 x dim f32 activation tile is << VMEM)


def _ru(n, m):
    """Round n up to a multiple of m."""
    return ((n + m - 1) // m) * m


# ----------------------------------------------------------------------------
# Fused Pallas kernel: all FcnBlocks + proj_out in a single pallas_call.
# ----------------------------------------------------------------------------
def _fcn_fused_kernel(add_outer_flags, x_ref, *refs):
    """refs = 4 params per block (w1, b1, w2, b2; BN pre-folded) + (wp, bp) + o_ref."""
    n_blocks = len(add_outer_flags)
    o_ref = refs[-1]
    p = refs[:-1]

    h = x_ref[...].astype(jnp.float32)
    for blk in range(n_blocks):              # static unroll: per-block shapes differ
        w1, b1 = p[4 * blk + 0][...], p[4 * blk + 1][...]
        w2, b2 = p[4 * blk + 2][...], p[4 * blk + 3][...]

        outer_res = h
        # fc1 (+bn1 folded): bf16 operands (native MXU rate), f32 accumulation.
        t = jnp.dot(h.astype(w1.dtype), w1, preferred_element_type=jnp.float32) + b1
        inner_res = t                        # residual taken after bn1, before relu
        t = jnp.maximum(t, 0.0)              # ReLU; dropout = identity (eval mode)
        # fc2 (+bn2 folded)
        t = jnp.dot(t.astype(w2.dtype), w2, preferred_element_type=jnp.float32) + b2
        t = t + inner_res                    # FcnBlock residual
        if add_outer_flags[blk]:             # static flag -> resolved at trace time
            t = t + outer_res                # FCN-level outer residual
        h = t

    wp, bp = p[4 * n_blocks][...], p[4 * n_blocks + 1][...]
    o_ref[...] = (jnp.dot(h.astype(wp.dtype), wp, preferred_element_type=jnp.float32)
                  + bp).astype(o_ref.dtype)  # proj_out


# ----------------------------------------------------------------------------
# Wrapper: batch-tiled grid, natural feature dims, VMEM-resident weights.
# ----------------------------------------------------------------------------
def _vmem_limit_bytes():
    try:
        cap = pltpu.get_tpu_info().vmem_capacity_bytes
    except Exception:
        cap = 64 * 1024 * 1024               # v7x (smallest per-TC VMEM) as safe default
    return int(cap) * 3 // 4                  # ~48 MiB on v7x, ~96 MiB on v5e/v6e


def _choose_tm(batch):
    tm = min(MAX_TM, _ru(batch, SUBLANE))
    # Ensure >= 2 grid steps whenever the batch can be split on a sublane boundary, so
    # v7x's two TensorCores both get a batch shard (no effect on single-TC v5e/v6e).
    if batch > SUBLANE and _ru(batch, SUBLANE) // tm < 2:
        tm = _ru(pl.cdiv(batch, 2), SUBLANE)
    return tm


def _fcn_forward_impl(x, packed, single_buffer_weights):
    B, in_dim = x.shape
    assert in_dim == packed["in_dim"]
    out_dim = packed["out_dim"]
    flat_params = packed["flat_params"]

    tm = _choose_tm(B)
    b_pad = _ru(B, tm)
    if b_pad != B:                             # pad the batch axis only (rows of zeros)
        x = jnp.pad(x, ((0, b_pad - B), (0, 0)))

    vmem_limit = _vmem_limit_bytes()
    buf_count = 1 if single_buffer_weights else 2
    weight_bytes = sum(int(p.size) * p.dtype.itemsize for p in flat_params) * buf_count
    if weight_bytes > vmem_limit // 2:
        # TODO(synk): for very deep/wide dim_list, split the stack into several
        # pallas_calls (or pipeline weights via a layer grid axis) instead of keeping all
        # weights VMEM-resident -- required on v7x's 64 MiB VMEM.
        raise NotImplementedError("resident weights exceed the VMEM budget; split stack")

    weight_kwargs = (dict(pipeline_mode=pl.Buffered(1))
                     if single_buffer_weights else {})

    # Activation: batch-tiled, last dim = full array dim (lane rule satisfied).
    in_specs = [pl.BlockSpec((tm, in_dim), lambda i: (i, 0))]
    # Weights/biases: full-array blocks, constant index_map -> VMEM-resident across
    # batch tiles; single-buffered (no DMA between identical blocks to hide).
    in_specs += [pl.BlockSpec(p.shape, lambda i: (0, 0), **weight_kwargs)
                 for p in flat_params]

    out = pl.pallas_call(
        functools.partial(_fcn_fused_kernel, packed["add_outer"]),
        out_shape=jax.ShapeDtypeStruct((b_pad, out_dim), jnp.float32),
        grid=(b_pad // tm,),
        in_specs=in_specs,
        out_specs=pl.BlockSpec((tm, out_dim), lambda i: (i, 0)),
        compiler_params=pltpu.CompilerParams(
            dimension_semantics=("parallel",),   # shard batch tiles across v7x's 2 TCs
            vmem_limit_bytes=vmem_limit),
    )(x, *flat_params)

    return out[:B]


def fcn_forward(x, packed, *, single_buffer_weights=True):
    if not single_buffer_weights:
        return _fcn_forward_impl(x, packed, False)
    try:
        return _fcn_forward_impl(x, packed, True)
    except Exception:
        # pl.Buffered(1) (single-buffered resident weights) not supported by this jax
        # build -> fall back to default double buffering (identical semantics).
        return _fcn_forward_impl(x, packed, False)


# ----------------------------------------------------------------------------
# Deterministic parameter init (synthetic, no checkpoint).  Linear weights are stored
# pre-transposed as (in_features, out_features) so the kernel computes x @ W + b.
# ----------------------------------------------------------------------------
def _init_linear(key, in_dim, out_dim):
    kw, kb = jax.random.split(key)
    w = jax.random.normal(kw, (in_dim, out_dim), jnp.float32) * 0.1
    b = jax.random.normal(kb, (out_dim,), jnp.float32) * 0.05
    return w, b


def _init_bn(key, dim):
    kg, kb, km, kv = jax.random.split(key, 4)
    g = 1.0 + 0.1 * jax.random.normal(kg, (dim,), jnp.float32)
    beta = 0.05 * jax.random.normal(kb, (dim,), jnp.float32)
    rm = 0.1 * jax.random.normal(km, (dim,), jnp.float32)
    rv = jax.random.uniform(kv, (dim,), jnp.float32, 0.5, 1.5)
    return g, beta, rm, rv


def init_fcn_params(key, in_dim, out_dim, dim_list):
    dims = [in_dim] + list(dim_list)
    block_params = []
    for i in range(len(dims) - 1):
        key, k1, k2, k3, k4 = jax.random.split(key, 5)
        w1, b1 = _init_linear(k1, dims[i], dims[i + 1])
        g1, be1, rm1, rv1 = _init_bn(k2, dims[i + 1])
        w2, b2 = _init_linear(k3, dims[i + 1], dims[i + 1])
        g2, be2, rm2, rv2 = _init_bn(k4, dims[i + 1])
        block_params.append(dict(w1=w1, b1=b1, g1=g1, beta1=be1, rm1=rm1, rv1=rv1,
                                 w2=w2, b2=b2, g2=g2, beta2=be2, rm2=rm2, rv2=rv2))
    key, kp = jax.random.split(key)
    wp, bp = _init_linear(kp, dims[-1], out_dim)
    return block_params, dict(w=wp, b=bp), dims


# ----------------------------------------------------------------------------
# Parameter packing: fold eval-mode BN into the preceding Linear; keep natural feature
# shapes; weights in compute_dtype (bf16 default), biases/BN shifts in f32.
# ----------------------------------------------------------------------------
def _fold_bn(w, b, g, beta, rm, rv):
    scale = g * jax.lax.rsqrt(rv + EPS)          # (out,)
    return w * scale[None, :], (b - rm) * scale + beta


def pack_fcn_params(block_params, proj_params, dims, out_dim,
                    compute_dtype=jnp.bfloat16):
    start_dim = dims[0]
    add_outer, flat = [], []
    for i, p in enumerate(block_params):
        d_in, d_out = dims[i], dims[i + 1]
        ao = (d_out == start_dim)                # FCN.forward: `if dim == start_dim`
        if ao:
            assert d_in == d_out, "outer residual needs matching dims (as in PyTorch)"
        add_outer.append(ao)
        w1, b1 = _fold_bn(p["w1"], p["b1"], p["g1"], p["beta1"], p["rm1"], p["rv1"])
        w2, b2 = _fold_bn(p["w2"], p["b2"], p["g2"], p["beta2"], p["rm2"], p["rv2"])
        flat += [w1.astype(compute_dtype), b1.reshape(1, -1).astype(jnp.float32),
                 w2.astype(compute_dtype), b2.reshape(1, -1).astype(jnp.float32)]
    flat += [proj_params["w"].astype(compute_dtype),
             proj_params["b"].reshape(1, -1).astype(jnp.float32)]
    return dict(flat_params=flat, add_outer=tuple(add_outer),
                in_dim=dims[0], out_dim=out_dim)


# ----------------------------------------------------------------------------
# Pure-JAX reference (un-fused, BN explicit) for the correctness check.
# ----------------------------------------------------------------------------
def _ref_fcn(x, block_params, proj_params, dims):
    start_dim = dims[0]
    h = x
    for dim, p in zip(dims[1:], block_params):
        outer_res = h
        t = h @ p["w1"] + p["b1"]
        t = (t - p["rm1"]) * (p["g1"] / jnp.sqrt(p["rv1"] + EPS)) + p["beta1"]
        inner_res = t
        t = jnp.maximum(t, 0.0)
        t = t @ p["w2"] + p["b2"]
        t = (t - p["rm2"]) * (p["g2"] / jnp.sqrt(p["rv2"] + EPS)) + p["beta2"]
        t = t + inner_res
        if dim == start_dim:
            t = t + outer_res
        h = t
    return h @ proj_params["w"] + proj_params["b"]


# ----------------------------------------------------------------------------
if __name__ == "__main__":
    key = jax.random.PRNGKey(0)

    # FCN(in_dim=32, out_dim=16, dim_list=[32, 48]):
    #   block0: 32 -> 32  (outer residual added: 32 == start_dim)
    #   block1: 32 -> 48  (no outer residual)
    #   proj_out: 48 -> 16
    batch, in_dim, out_dim = 16, 32, 16
    dim_list = [32, 48]

    key, kx, kp = jax.random.split(key, 3)
    x = jax.random.normal(kx, (batch, in_dim), jnp.float32)

    block_params, proj_params, dims = init_fcn_params(kp, in_dim, out_dim, dim_list)
    ref = _ref_fcn(x, block_params, proj_params, dims)

    # f32 compute path: tight check against the pure-JAX reference.
    packed_f32 = pack_fcn_params(block_params, proj_params, dims, out_dim,
                                 compute_dtype=jnp.float32)
    out_f32 = jax.block_until_ready(fcn_forward(x, packed_f32))
    assert out_f32.shape == (batch, out_dim)
    assert jnp.allclose(out_f32, ref, atol=1e-4, rtol=1e-4), "f32 mismatch vs reference"

    # bf16-weight path (default performance config): native MXU rate on v6e/v7x.
    packed_bf16 = pack_fcn_params(block_params, proj_params, dims, out_dim)
    out_bf16 = jax.block_until_ready(fcn_forward(x, packed_bf16))
    assert out_bf16.shape == (batch, out_dim)
    assert jnp.allclose(out_bf16, ref, atol=5e-2, rtol=5e-2), "bf16 mismatch vs reference"

    print("KERNEL_OK")
</pallas_src>

<mosaic_0001>
module attributes {stable_mosaic.version = 11 : i64} {
  func.func @_fcn_fused_kernel(%arg0: i32, %arg1: memref<8x32xf32, #tpu.memory_space<vmem>>, %arg2: memref<32x32xf32, #tpu.memory_space<vmem>>, %arg3: memref<1x32xf32, #tpu.memory_space<vmem>>, %arg4: memref<32x32xf32, #tpu.memory_space<vmem>>, %arg5: memref<1x32xf32, #tpu.memory_space<vmem>>, %arg6: memref<32x48xf32, #tpu.memory_space<vmem>>, %arg7: memref<1x48xf32, #tpu.memory_space<vmem>>, %arg8: memref<48x48xf32, #tpu.memory_space<vmem>>, %arg9: memref<1x48xf32, #tpu.memory_space<vmem>>, %arg10: memref<48x16xf32, #tpu.memory_space<vmem>>, %arg11: memref<1x16xf32, #tpu.memory_space<vmem>>, %arg12: memref<8x16xf32, #tpu.memory_space<vmem>>) attributes {dimension_semantics = [#tpu.dimension_semantics<parallel>], iteration_bounds = array<i64: 2>, scalar_prefetch = 0 : i64, scratch_operands = 0 : i64, tpu.core_type = #tpu.core_type<tc>, window_params = [{transform_indices = @transform_0, window_bounds = array<i64: 8, 32>}, {pipeline_mode = #tpu.pipeline_mode<synchronous>, transform_indices = @transform_1, window_bounds = array<i64: 32, 32>}, {pipeline_mode = #tpu.pipeline_mode<synchronous>, transform_indices = @transform_2, window_bounds = array<i64: 1, 32>}, {pipeline_mode = #tpu.pipeline_mode<synchronous>, transform_indices = @transform_3, window_bounds = array<i64: 32, 32>}, {pipeline_mode = #tpu.pipeline_mode<synchronous>, transform_indices = @transform_4, window_bounds = array<i64: 1, 32>}, {pipeline_mode = #tpu.pipeline_mode<synchronous>, transform_indices = @transform_5, window_bounds = array<i64: 32, 48>}, {pipeline_mode = #tpu.pipeline_mode<synchronous>, transform_indices = @transform_6, window_bounds = array<i64: 1, 48>}, {pipeline_mode = #tpu.pipeline_mode<synchronous>, transform_indices = @transform_7, window_bounds = array<i64: 48, 48>}, {pipeline_mode = #tpu.pipeline_mode<synchronous>, transform_indices = @transform_8, window_bounds = array<i64: 1, 48>}, {pipeline_mode = #tpu.pipeline_mode<synchronous>, transform_indices = @transform_9, window_bounds = array<i64: 48, 16>}, {pipeline_mode = #tpu.pipeline_mode<synchronous>, transform_indices = @transform_10, window_bounds = array<i64: 1, 16>}, {transform_indices = @transform_11, window_bounds = array<i64: 8, 16>}]} {
    %c0 = arith.constant 0 : index
    %c0_0 = arith.constant 0 : index
    %0 = vector.load %arg1[%c0, %c0_0] : memref<8x32xf32, #tpu.memory_space<vmem>>, vector<8x32xf32>
    %c0_1 = arith.constant 0 : index
    %c0_2 = arith.constant 0 : index
    %1 = vector.load %arg2[%c0_1, %c0_2] : memref<32x32xf32, #tpu.memory_space<vmem>>, vector<32x32xf32>
    %c0_3 = arith.constant 0 : index
    %c0_4 = arith.constant 0 : index
    %2 = vector.load %arg3[%c0_3, %c0_4] : memref<1x32xf32, #tpu.memory_space<vmem>>, vector<1x32xf32>
    %c0_5 = arith.constant 0 : index
    %c0_6 = arith.constant 0 : index
    %3 = vector.load %arg4[%c0_5, %c0_6] : memref<32x32xf32, #tpu.memory_space<vmem>>, vector<32x32xf32>
    %c0_7 = arith.constant 0 : index
    %c0_8 = arith.constant 0 : index
    %4 = vector.load %arg5[%c0_7, %c0_8] : memref<1x32xf32, #tpu.memory_space<vmem>>, vector<1x32xf32>
    %cst = arith.constant dense<0.000000e+00> : vector<8x32xf32>
    %5 = tpu.matmul %0, %1, %cst {dimension_numbers = #tpu.dot_dimension_numbers<[1], [0], [0], [1], [0, 0, 1, 1], [], []>} : vector<8x32xf32>, vector<32x32xf32>, vector<8x32xf32> -> vector<8x32xf32>
    %6 = vector.broadcast %2 : vector<1x32xf32> to vector<8x32xf32>
    %7 = arith.addf %5, %6 : vector<8x32xf32>
    %cst_9 = arith.constant 0.000000e+00 : f32
    %8 = vector.broadcast %cst_9 : f32 to vector<8x32xf32>
    %9 = arith.maximumf %7, %8 : vector<8x32xf32>
    %cst_10 = arith.constant dense<0.000000e+00> : vector<8x32xf32>
    %10 = tpu.matmul %9, %3, %cst_10 {dimension_numbers = #tpu.dot_dimension_numbers<[1], [0], [0], [1], [0, 0, 1, 1], [], []>} : vector<8x32xf32>, vector<32x32xf32>, vector<8x32xf32> -> vector<8x32xf32>
    %11 = vector.broadcast %4 : vector<1x32xf32> to vector<8x32xf32>
    %12 = arith.addf %10, %11 : vector<8x32xf32>
    %13 = arith.addf %12, %7 : vector<8x32xf32>
    %14 = arith.addf %13, %0 : vector<8x32xf32>
    %c0_11 = arith.constant 0 : index
    %c0_12 = arith.constant 0 : index
    %15 = vector.load %arg6[%c0_11, %c0_12] : memref<32x48xf32, #tpu.memory_space<vmem>>, vector<32x48xf32>
    %c0_13 = arith.constant 0 : index
    %c0_14 = arith.constant 0 : index
    %16 = vector.load %arg7[%c0_13, %c0_14] : memref<1x48xf32, #tpu.memory_space<vmem>>, vector<1x48xf32>
    %c0_15 = arith.constant 0 : index
    %c0_16 = arith.constant 0 : index
    %17 = vector.load %arg8[%c0_15, %c0_16] : memref<48x48xf32, #tpu.memory_space<vmem>>, vector<48x48xf32>
    %c0_17 = arith.constant 0 : index
    %c0_18 = arith.constant 0 : index
    %18 = vector.load %arg9[%c0_17, %c0_18] : memref<1x48xf32, #tpu.memory_space<vmem>>, vector<1x48xf32>
    %cst_19 = arith.constant dense<0.000000e+00> : vector<8x48xf32>
    %19 = tpu.matmul %14, %15, %cst_19 {dimension_numbers = #tpu.dot_dimension_numbers<[1], [0], [0], [1], [0, 0, 1, 1], [], []>} : vector<8x32xf32>, vector<32x48xf32>, vector<8x48xf32> -> vector<8x48xf32>
    %20 = vector.broadcast %16 : vector<1x48xf32> to vector<8x48xf32>
    %21 = arith.addf %19, %20 : vector<8x48xf32>
    %cst_20 = arith.constant 0.000000e+00 : f32
    %22 = vector.broadcast %cst_20 : f32 to vector<8x48xf32>
    %23 = arith.maximumf %21, %22 : vector<8x48xf32>
    %cst_21 = arith.constant dense<0.000000e+00> : vector<8x48xf32>
    %24 = tpu.matmul %23, %17, %cst_21 {dimension_numbers = #tpu.dot_dimension_numbers<[1], [0], [0], [1], [0, 0, 1, 1], [], []>} : vector<8x48xf32>, vector<48x48xf32>, vector<8x48xf32> -> vector<8x48xf32>
    %25 = vector.broadcast %18 : vector<1x48xf32> to vector<8x48xf32>
    %26 = arith.addf %24, %25 : vector<8x48xf32>
    %27 = arith.addf %26, %21 : vector<8x48xf32>
    %c0_22 = arith.constant 0 : index
    %c0_23 = arith.constant 0 : index
    %28 = vector.load %arg10[%c0_22, %c0_23] : memref<48x16xf32, #tpu.memory_space<vmem>>, vector<48x16xf32>
    %c0_24 = arith.constant 0 : index
    %c0_25 = arith.constant 0 : index
    %29 = vector.load %arg11[%c0_24, %c0_25] : memref<1x16xf32, #tpu.memory_space<vmem>>, vector<1x16xf32>
    %cst_26 = arith.constant dense<0.000000e+00> : vector<8x16xf32>
    %30 = tpu.matmul %27, %28, %cst_26 {dimension_numbers = #tpu.dot_dimension_numbers<[1], [0], [0], [1], [0, 0, 1, 1], [], []>} : vector<8x48xf32>, vector<48x16xf32>, vector<8x16xf32> -> vector<8x16xf32>
    %31 = vector.broadcast %29 : vector<1x16xf32> to vector<8x16xf32>
    %32 = arith.addf %30, %31 : vector<8x16xf32>
    %c0_27 = arith.constant 0 : index
    %c0_28 = arith.constant 0 : index
    %33 = vector.load %arg12[%c0_27, %c0_28] : memref<8x16xf32, #tpu.memory_space<vmem>>, vector<8x16xf32>
    tpu.vector_store %arg12[%c0_27, %c0_28], %32 {strides = array<i32>} : memref<8x16xf32, #tpu.memory_space<vmem>>, vector<8x16xf32>,
    return
  }
  func.func @transform_0(%arg0: i32) -> (i32, i32) {
    %c0_i32 = arith.constant 0 : i32
    %c0_i32_0 = arith.constant 0 : i32
    return %arg0, %c0_i32 : i32, i32
  }
  func.func @transform_1(%arg0: i32) -> (i32, i32) {
    %c0_i32 = arith.constant 0 : i32
    %c0_i32_0 = arith.constant 0 : i32
    %c0_i32_1 = arith.constant 0 : i32
    return %c0_i32, %c0_i32_0 : i32, i32
  }
  func.func @transform_2(%arg0: i32) -> (i32, i32) {
    %c0_i32 = arith.constant 0 : i32
    %c0_i32_0 = arith.constant 0 : i32
    %c0_i32_1 = arith.constant 0 : i32
    return %c0_i32, %c0_i32_0 : i32, i32
  }
  func.func @transform_3(%arg0: i32) -> (i32, i32) {
    %c0_i32 = arith.constant 0 : i32
    %c0_i32_0 = arith.constant 0 : i32
    %c0_i32_1 = arith.constant 0 : i32
    return %c0_i32, %c0_i32_0 : i32, i32
  }
  func.func @transform_4(%arg0: i32) -> (i32, i32) {
    %c0_i32 = arith.constant 0 : i32
    %c0_i32_0 = arith.constant 0 : i32
    %c0_i32_1 = arith.constant 0 : i32
    return %c0_i32, %c0_i32_0 : i32, i32
  }
  func.func @transform_5(%arg0: i32) -> (i32, i32) {
    %c0_i32 = arith.constant 0 : i32
    %c0_i32_0 = arith.constant 0 : i32
    %c0_i32_1 = arith.constant 0 : i32
    return %c0_i32, %c0_i32_0 : i32, i32
  }
  func.func @transform_6(%arg0: i32) -> (i32, i32) {
    %c0_i32 = arith.constant 0 : i32
    %c0_i32_0 = arith.constant 0 : i32
    %c0_i32_1 = arith.constant 0 : i32
    return %c0_i32, %c0_i32_0 : i32, i32
  }
  func.func @transform_7(%arg0: i32) -> (i32, i32) {
    %c0_i32 = arith.constant 0 : i32
    %c0_i32_0 = arith.constant 0 : i32
    %c0_i32_1 = arith.constant 0 : i32
    return %c0_i32, %c0_i32_0 : i32, i32
  }
  func.func @transform_8(%arg0: i32) -> (i32, i32) {
    %c0_i32 = arith.constant 0 : i32
    %c0_i32_0 = arith.constant 0 : i32
    %c0_i32_1 = arith.constant 0 : i32
    return %c0_i32, %c0_i32_0 : i32, i32
  }
  func.func @transform_9(%arg0: i32) -> (i32, i32) {
    %c0_i32 = arith.constant 0 : i32
    %c0_i32_0 = arith.constant 0 : i32
    %c0_i32_1 = arith.constant 0 : i32
    return %c0_i32, %c0_i32_0 : i32, i32
  }
  func.func @transform_10(%arg0: i32) -> (i32, i32) {
    %c0_i32 = arith.constant 0 : i32
    %c0_i32_0 = arith.constant 0 : i32
    %c0_i32_1 = arith.constant 0 : i32
    return %c0_i32, %c0_i32_0 : i32, i32
  }
  func.func @transform_11(%arg0: i32) -> (i32, i32) {
    %c0_i32 = arith.constant 0 : i32
    %c0_i32_0 = arith.constant 0 : i32
    return %arg0, %c0_i32 : i32, i32
  }
}

module attributes {stable_mosaic.version = 11 : i64} {
  func.func @_fcn_fused_kernel(%arg0: i32, %arg1: memref<8x32xf32, #tpu.memory_space<vmem>>, %arg2: memref<32x32xf32, #tpu.memory_space<vmem>>, %arg3: memref<1x32xf32, #tpu.memory_space<vmem>>, %arg4: memref<32x32xf32, #tpu.memory_space<vmem>>, %arg5: memref<1x32xf32, #tpu.memory_space<vmem>>, %arg6: memref<32x48xf32, #tpu.memory_space<vmem>>, %arg7: memref<1x48xf32, #tpu.memory_space<vmem>>, %arg8: memref<48x48xf32, #tpu.memory_space<vmem>>, %arg9: memref<1x48xf32, #tpu.memory_space<vmem>>, %arg10: memref<48x16xf32, #tpu.memory_space<vmem>>, %arg11: memref<1x16xf32, #tpu.memory_space<vmem>>, %arg12: memref<8x16xf32, #tpu.memory_space<vmem>>) attributes {dimension_semantics = [#tpu.dimension_semantics<parallel>], iteration_bounds = array<i64: 2>, scalar_prefetch = 0 : i64, scratch_operands = 0 : i64, tpu.core_type = #tpu.core_type<tc>, window_params = [{transform_indices = @transform_0, window_bounds = array<i64: 8, 32>}, {pipeline_mode = #tpu.pipeline_mode<synchronous>, transform_indices = @transform_1, window_bounds = array<i64: 32, 32>}, {pipeline_mode = #tpu.pipeline_mode<synchronous>, transform_indices = @transform_2, window_bounds = array<i64: 1, 32>}, {pipeline_mode = #tpu.pipeline_mode<synchronous>, transform_indices = @transform_3, window_bounds = array<i64: 32, 32>}, {pipeline_mode = #tpu.pipeline_mode<synchronous>, transform_indices = @transform_4, window_bounds = array<i64: 1, 32>}, {pipeline_mode = #tpu.pipeline_mode<synchronous>, transform_indices = @transform_5, window_bounds = array<i64: 32, 48>}, {pipeline_mode = #tpu.pipeline_mode<synchronous>, transform_indices = @transform_6, window_bounds = array<i64: 1, 48>}, {pipeline_mode = #tpu.pipeline_mode<synchronous>, transform_indices = @transform_7, window_bounds = array<i64: 48, 48>}, {pipeline_mode = #tpu.pipeline_mode<synchronous>, transform_indices = @transform_8, window_bounds = array<i64: 1, 48>}, {pipeline_mode = #tpu.pipeline_mode<synchronous>, transform_indices = @transform_9, window_bounds = array<i64: 48, 16>}, {pipeline_mode = #tpu.pipeline_mode<synchronous>, transform_indices = @transform_10, window_bounds = array<i64: 1, 16>}, {transform_indices = @transform_11, window_bounds = array<i64: 8, 16>}]} {
    %c0 = arith.constant 0 : index
    %c0_0 = arith.constant 0 : index
    %0 = vector.load %arg1[%c0, %c0_0] : memref<8x32xf32, #tpu.memory_space<vmem>>, vector<8x32xf32>
    %c0_1 = arith.constant 0 : index
    %c0_2 = arith.constant 0 : index
    %1 = vector.load %arg2[%c0_1, %c0_2] : memref<32x32xf32, #tpu.memory_space<vmem>>, vector<32x32xf32>
    %c0_3 = arith.constant 0 : index
    %c0_4 = arith.constant 0 : index
    %2 = vector.load %arg3[%c0_3, %c0_4] : memref<1x32xf32, #tpu.memory_space<vmem>>, vector<1x32xf32>
    %c0_5 = arith.constant 0 : index
    %c0_6 = arith.constant 0 : index
    %3 = vector.load %arg4[%c0_5, %c0_6] : memref<32x32xf32, #tpu.memory_space<vmem>>, vector<32x32xf32>
    %c0_7 = arith.constant 0 : index
    %c0_8 = arith.constant 0 : index
    %4 = vector.load %arg5[%c0_7, %c0_8] : memref<1x32xf32, #tpu.memory_space<vmem>>, vector<1x32xf32>
    %cst = arith.constant dense<0.000000e+00> : vector<8x32xf32>
    %5 = tpu.matmul %0, %1, %cst {dimension_numbers = #tpu.dot_dimension_numbers<[1], [0], [0], [1], [0, 0, 1, 1], [], []>} : vector<8x32xf32>, vector<32x32xf32>, vector<8x32xf32> -> vector<8x32xf32>
    %6 = vector.broadcast %2 : vector<1x32xf32> to vector<8x32xf32>
    %7 = arith.addf %5, %6 : vector<8x32xf32>
    %cst_9 = arith.constant 0.000000e+00 : f32
    %8 = vector.broadcast %cst_9 : f32 to vector<8x32xf32>
    %9 = arith.maximumf %7, %8 : vector<8x32xf32>
    %cst_10 = arith.constant dense<0.000000e+00> : vector<8x32xf32>
    %10 = tpu.matmul %9, %3, %cst_10 {dimension_numbers = #tpu.dot_dimension_numbers<[1], [0], [0], [1], [0, 0, 1, 1], [], []>} : vector<8x32xf32>, vector<32x32xf32>, vector<8x32xf32> -> vector<8x32xf32>
    %11 = vector.broadcast %4 : vector<1x32xf32> to vector<8x32xf32>
    %12 = arith.addf %10, %11 : vector<8x32xf32>
    %13 = arith.addf %12, %7 : vector<8x32xf32>
    %14 = arith.addf %13, %0 : vector<8x32xf32>
    %c0_11 = arith.constant 0 : index
    %c0_12 = arith.constant 0 : index
    %15 = vector.load %arg6[%c0_11, %c0_12] : memref<32x48xf32, #tpu.memory_space<vmem>>, vector<32x48xf32>
    %c0_13 = arith.constant 0 : index
    %c0_14 = arith.constant 0 : index
    %16 = vector.load %arg7[%c0_13, %c0_14] : memref<1x48xf32, #tpu.memory_space<vmem>>, vector<1x48xf32>
    %c0_15 = arith.constant 0 : index
    %c0_16 = arith.constant 0 : index
    %17 = vector.load %arg8[%c0_15, %c0_16] : memref<48x48xf32, #tpu.memory_space<vmem>>, vector<48x48xf32>
    %c0_17 = arith.constant 0 : index
    %c0_18 = arith.constant 0 : index
    %18 = vector.load %arg9[%c0_17, %c0_18] : memref<1x48xf32, #tpu.memory_space<vmem>>, vector<1x48xf32>
    %cst_19 = arith.constant dense<0.000000e+00> : vector<8x48xf32>
    %19 = tpu.matmul %14, %15, %cst_19 {dimension_numbers = #tpu.dot_dimension_numbers<[1], [0], [0], [1], [0, 0, 1, 1], [], []>} : vector<8x32xf32>, vector<32x48xf32>, vector<8x48xf32> -> vector<8x48xf32>
    %20 = vector.broadcast %16 : vector<1x48xf32> to vector<8x48xf32>
    %21 = arith.addf %19, %20 : vector<8x48xf32>
    %cst_20 = arith.constant 0.000000e+00 : f32
    %22 = vector.broadcast %cst_20 : f32 to vector<8x48xf32>
    %23 = arith.maximumf %21, %22 : vector<8x48xf32>
    %cst_21 = arith.constant dense<0.000000e+00> : vector<8x48xf32>
    %24 = tpu.matmul %23, %17, %cst_21 {dimension_numbers = #tpu.dot_dimension_numbers<[1], [0], [0], [1], [0, 0, 1, 1], [], []>} : vector<8x48xf32>, vector<48x48xf32>, vector<8x48xf32> -> vector<8x48xf32>
    %25 = vector.broadcast %18 : vector<1x48xf32> to vector<8x48xf32>
    %26 = arith.addf %24, %25 : vector<8x48xf32>
    %27 = arith.addf %26, %21 : vector<8x48xf32>
    %c0_22 = arith.constant 0 : index
    %c0_23 = arith.constant 0 : index
    %28 = vector.load %arg10[%c0_22, %c0_23] : memref<48x16xf32, #tpu.memory_space<vmem>>, vector<48x16xf32>
    %c0_24 = arith.constant 0 : index
    %c0_25 = arith.constant 0 : index
    %29 = vector.load %arg11[%c0_24, %c0_25] : memref<1x16xf32, #tpu.memory_space<vmem>>, vector<1x16xf32>
    %cst_26 = arith.constant dense<0.000000e+00> : vector<8x16xf32>
    %30 = tpu.matmul %27, %28, %cst_26 {dimension_numbers = #tpu.dot_dimension_numbers<[1], [0], [0], [1], [0, 0, 1, 1], [], []>} : vector<8x48xf32>, vector<48x16xf32>, vector<8x16xf32> -> vector<8x16xf32>
    %31 = vector.broadcast %29 : vector<1x16xf32> to vector<8x16xf32>
    %32 = arith.addf %30, %31 : vector<8x16xf32>
    %c0_27 = arith.constant 0 : index
    %c0_28 = arith.constant 0 : index
    %33 = vector.load %arg12[%c0_27, %c0_28] : memref<8x16xf32, #tpu.memory_space<vmem>>, vector<8x16xf32>
    tpu.vector_store %arg12[%c0_27, %c0_28], %32 {strides = array<i32>} : memref<8x16xf32, #tpu.memory_space<vmem>>, vector<8x16xf32>,
    return
  }
  func.func @transform_0(%arg0: i32) -> (i32, i32) {
    %c0_i32 = arith.constant 0 : i32
    %c0_i32_0 = arith.constant 0 : i32
    return %arg0, %c0_i32 : i32, i32
  }
  func.func @transform_1(%arg0: i32) -> (i32, i32) {
    %c0_i32 = arith.constant 0 : i32
    %c0_i32_0 = arith.constant 0 : i32
    %c0_i32_1 = arith.constant 0 : i32
    return %c0_i32, %c0_i32_0 : i32, i32
  }
  func.func @transform_2(%arg0: i32) -> (i32, i32) {
    %c0_i32 = arith.constant 0 : i32
    %c0_i32_0 = arith.constant 0 : i32
    %c0_i32_1 = arith.constant 0 : i32
    return %c0_i32, %c0_i32_0 : i32, i32
  }
  func.func @transform_3(%arg0: i32) -> (i32, i32) {
    %c0_i32 = arith.constant 0 : i32
    %c0_i32_0 = arith.constant 0 : i32
    %c0_i32_1 = arith.constant 0 : i32
    return %c0_i32, %c0_i32_0 : i32, i32
  }
  func.func @transform_4(%arg0: i32) -> (i32, i32) {
    %c0_i32 = arith.constant 0 : i32
    %c0_i32_0 = arith.constant 0 : i32
    %c0_i32_1 = arith.constant 0 : i32
    return %c0_i32, %c0_i32_0 : i32, i32
  }
  func.func @transform_5(%arg0: i32) -> (i32, i32) {
    %c0_i32 = arith.constant 0 : i32
    %c0_i32_0 = arith.constant 0 : i32
    %c0_i32_1 = arith.constant 0 : i32
    return %c0_i32, %c0_i32_0 : i32, i32
  }
  func.func @transform_6(%arg0: i32) -> (i32, i32) {
    %c0_i32 = arith.constant 0 : i32
    %c0_i32_0 = arith.constant 0 : i32
    %c0_i32_1 = arith.constant 0 : i32
    return %c0_i32, %c0_i32_0 : i32, i32
  }
  func.func @transform_7(%arg0: i32) -> (i32, i32) {
    %c0_i32 = arith.constant 0 : i32
    %c0_i32_0 = arith.constant 0 : i32
    %c0_i32_1 = arith.constant 0 : i32
    return %c0_i32, %c0_i32_0 : i32, i32
  }
  func.func @transform_8(%arg0: i32) -> (i32, i32) {
    %c0_i32 = arith.constant 0 : i32
    %c0_i32_0 = arith.constant 0 : i32
    %c0_i32_1 = arith.constant 0 : i32
    return %c0_i32, %c0_i32_0 : i32, i32
  }
  func.func @transform_9(%arg0: i32) -> (i32, i32) {
    %c0_i32 = arith.constant 0 : i32
    %c0_i32_0 = arith.constant 0 : i32
    %c0_i32_1 = arith.constant 0 : i32
    return %c0_i32, %c0_i32_0 : i32, i32
  }
  func.func @transform_10(%arg0: i32) -> (i32, i32) {
    %c0_i32 = arith.constant 0 : i32
    %c0_i32_0 = arith.constant 0 : i32
    %c0_i32_1 = arith.constant 0 : i32
    return %c0_i32, %c0_i32_0 : i32, i32
  }
  func.func @transform_11(%arg0: i32) -> (i32, i32) {
    %c0_i32 = arith.constant 0 : i32
    %c0_i32_0 = arith.constant 0 : i32
    return %arg0, %c0_i32 : i32, i32
  }
}

</mosaic_0001>

<llo_original>
// kernel: tpu_custom_call.1
$region0: #{tpu_custom_call.1}
  #allocation0 [shape = 'u32[]', space=smem, size = 0x4, offset = 0x4, fixed_abs, tag = 'smem constant byte address 0x4 - core index']
  #allocation1 [shape = 'u32[144,128]{1,0:T(1,128)}', space=vmem, size = 0x12000, scoped, tag = 'internal scratch']
  %s0 = inlined_call_operand.vmem [shape: f32[16,32], index: 0, kind: input, shape index: {}]
  %s1 = inlined_call_operand.hbm [shape: f32[32,32], index: 1, kind: input, shape index: {}]
  %s2 = inlined_call_operand.hbm [shape: f32[1,32], index: 2, kind: input, shape index: {}]
  %s3 = inlined_call_operand.hbm [shape: f32[32,32], index: 3, kind: input, shape index: {}]
  %s4 = inlined_call_operand.hbm [shape: f32[1,32], index: 4, kind: input, shape index: {}]
  %s5 = inlined_call_operand.hbm [shape: f32[32,48], index: 5, kind: input, shape index: {}]
  %s6 = inlined_call_operand.hbm [shape: f32[1,48], index: 6, kind: input, shape index: {}]
  %s7 = inlined_call_operand.vmem [shape: f32[48,48], index: 7, kind: input, shape index: {}]
  %s8 = inlined_call_operand.hbm [shape: f32[1,48], index: 8, kind: input, shape index: {}]
  %s9 = inlined_call_operand.vmem [shape: f32[48,16], index: 9, kind: input, shape index: {}]
  %s10 = inlined_call_operand.vmem [shape: f32[1,16], index: 10, kind: input, shape index: {}]
  %s11 = inlined_call_operand.hbm [shape: f32[16,16], index: 11, kind: output, shape index: {}]
  %s12 = sld [smem:[#allocation0]]
  $region105: #{tpu_custom_call.1} parent=0
    _
  %s14 = ssub.s32 1, %s12
  %s15 = scalar_select 0, %s14, %s12
  $region1: #{tpu_custom_call.1} parent=0
    #allocation2 [shape = 'u8[16384]{0}', space=vmem, size = 0x4000, scoped, tag = 'input window, operand 1, single buffered']
    #allocation3 [shape = 's32[2]{0}', space=sflag, size = 0x8, scoped, tag = 'scoped memory for tpu_custom_call.1']
    #allocation4 [shape = 's32[2]{0}', space=sflag, size = 0x8, scoped, tag = 'scoped memory for tpu_custom_call.1']
    #allocation5 [shape = 'u8[512]{0}', space=vmem, size = 0x400, scoped, tag = 'input window, operand 2, single buffered']
    #allocation6 [shape = 's32[1]{0}', space=sflag, size = 0x4, scoped, tag = 'scoped memory for tpu_custom_call.1']
    #allocation7 [shape = 'u8[16384]{0}', space=vmem, size = 0x4000, scoped, tag = 'input window, operand 3, single buffered']
    #allocation8 [shape = 'u8[512]{0}', space=vmem, size = 0x400, scoped, tag = 'input window, operand 4, single buffered']
    #allocation9 [shape = 's32[1]{0}', space=sflag, size = 0x4, scoped, tag = 'scoped memory for tpu_custom_call.1']
    #allocation10 [shape = 'u8[16384]{0}', space=vmem, size = 0x4000, scoped, tag = 'input window, operand 5, single buffered']
    #allocation11 [shape = 'u8[512]{0}', space=vmem, size = 0x400, scoped, tag = 'input window, operand 6, single buffered']
    #allocation12 [shape = 's32[1]{0}', space=sflag, size = 0x4, scoped, tag = 'scoped memory for tpu_custom_call.1']
    #allocation13 [shape = 'u8[512]{0}', space=vmem, size = 0x400, scoped, tag = 'input window, operand 8, single buffered']
    #allocation14 [shape = 'u8[8192]{0}', space=vmem, size = 0x2000, scoped, tag = 'output window, operand 0']
    %16 = vsyncpa [#allocation3], 0
    %17 = vsyncpa [#allocation6], 0
    %18 = vsyncpa [#allocation9], 0
    %19 = vsyncpa [#allocation12], 0
    %20 = vsyncpa [#allocation4], 0
    %s21 = scalar_lea.sflag [#allocation4], 1
    %22 = vsyncpa %s21, 0
    loop: start=0, step=1, limit=4
    $region2: #{tpu_custom_call.1} parent=1 // loop_pre_header
      _
    $region3: #{tpu_custom_call.1} parent=1 // loop_header
      %s24 = sphi 0, %s28
      %p25 = scmp.ge.s32.totalorder %s24, 4
      %s34 = sphi 0, %s36
      %s37 = sphi 0, %s34
      %s38 = sphi 0, %s37
      %s54 = sphi 0, %s38
      %s58 = sphi 0, %s58
      %s60 = sphi 0, %s58
      %s61 = sphi 0, %s60
      %s75 = sphi 0, %s61
      %s79 = sphi 0, %s79
      %s81 = sphi 0, %s79
      %s82 = sphi 0, %s81
      %s96 = sphi 0, %s82
      %s100 = sphi 0, %s100
      %s102 = sphi 0, %s100
      %s103 = sphi 0, %s102
      %s117 = sphi 0, %s103
      %s121 = sphi 0, %s121
      %s123 = sphi 0, %s121
      %s124 = sphi 0, %s123
      %s138 = sphi 0, %s124
      %s142 = sphi 0, %s142
      %s144 = sphi 0, %s142
      %s145 = sphi 0, %s144
      %s159 = sphi 0, %s145
      %s163 = sphi 0, %s163
      %s165 = sphi 0, %s163
      %s166 = sphi 0, %s165
      %s180 = sphi 0, %s166
      %s184 = sphi 0, %s184
      %s186 = sphi 0, %s184
      %s187 = sphi 0, %s186
      %s201 = sphi 0, %s187
      %s205 = sphi 0, %s205
      %s207 = sphi 0, %s205
      %s208 = sphi 0, %s207
      %s222 = sphi 0, %s208
      %s226 = sphi 0, %s226
      %s228 = sphi 0, %s226
      %s229 = sphi 0, %s228
      %s243 = sphi 0, %s229
      %s247 = sphi 0, %s247
      %s249 = sphi 0, %s247
      %s250 = sphi 0, %s249
      %s264 = sphi 0, %s250
      %s270 = sphi 0, %s272
      %s273 = sphi 0, %s270
      %s274 = sphi 0, %s273
      %s290 = sphi 0, %s274
    $region4: #{tpu_custom_call.1} parent=1 // loop_header_branch
      %27 = sbr.rel (%p25) target = $region8
    $region5: #{tpu_custom_call.1} parent=1 // loop_body
      %s29 = ssub.s32 %s24, 1
      %s30 = ssub.s32 %s24, 2
      %s31 = sadd.s32 %s24, 1
      %s32 = ssub.s32 %s24, %s31
      %p33 = scmp.eq.s32.totalorder %s32, 0
      %s35 = sadd.s32 %s34, 1
      %s36 = scalar_select %p33, %s34, %s35
      %p39 = pneg %p33
      %p40 = scmp.eq.s32.totalorder %s24, 1
      %p41 = por %p39, %p40
      %p42 = scmp.ne.s32.totalorder %s34, %s37
      %p43 = scmp.eq.s32.totalorder %s24, 0
      %p44 = por %p42, %p43
      %p45 = scmp.ne.s32.totalorder %s34, %s37
      %p46 = scmp.eq.s32.totalorder %s29, 1
      %p47 = por %p45, %p46
      %p48 = scmp.ne.s32.totalorder %s37, %s38
      %p49 = scmp.eq.s32.totalorder %s29, 0
      %p50 = por %p48, %p49
      %p51 = scmp.ne.s32.totalorder %s37, %s38
      %p52 = scmp.eq.s32.totalorder %s30, 1
      %p53 = por %p51, %p52
      %p55 = scmp.ne.s32.totalorder %s38, %s54
      %p56 = scmp.eq.s32.totalorder %s30, 0
      %p57 = por %p55, %p56
      %s59 = sadd.s32 %s58, 1
      %p62 = scmp.eq.s32.totalorder %s24, 1
      %p63 = scmp.ne.s32.totalorder %s58, %s60
      %p64 = scmp.eq.s32.totalorder %s24, 0
      %p65 = por %p63, %p64
      %p66 = scmp.ne.s32.totalorder %s58, %s60
      %p67 = scmp.eq.s32.totalorder %s29, 1
      %p68 = por %p66, %p67
      %p69 = scmp.ne.s32.totalorder %s60, %s61
      %p70 = scmp.eq.s32.totalorder %s29, 0
      %p71 = por %p69, %p70
      %p72 = scmp.ne.s32.totalorder %s60, %s61
      %p73 = scmp.eq.s32.totalorder %s30, 1
      %p74 = por %p72, %p73
      %p76 = scmp.ne.s32.totalorder %s61, %s75
      %p77 = scmp.eq.s32.totalorder %s30, 0
      %p78 = por %p76, %p77
      %s80 = sadd.s32 %s79, 1
      %p83 = scmp.eq.s32.totalorder %s24, 1
      %p84 = scmp.ne.s32.totalorder %s79, %s81
      %p85 = scmp.eq.s32.totalorder %s24, 0
      %p86 = por %p84, %p85
      %p87 = scmp.ne.s32.totalorder %s79, %s81
      %p88 = scmp.eq.s32.totalorder %s29, 1
      %p89 = por %p87, %p88
      %p90 = scmp.ne.s32.totalorder %s81, %s82
      %p91 = scmp.eq.s32.totalorder %s29, 0
      %p92 = por %p90, %p91
      %p93 = scmp.ne.s32.totalorder %s81, %s82
      %p94 = scmp.eq.s32.totalorder %s30, 1
      %p95 = por %p93, %p94
      %p97 = scmp.ne.s32.totalorder %s82, %s96
      %p98 = scmp.eq.s32.totalorder %s30, 0
      %p99 = por %p97, %p98
      %s101 = sadd.s32 %s100, 1
      %p104 = scmp.eq.s32.totalorder %s24, 1
      %p105 = scmp.ne.s32.totalorder %s100, %s102
      %p106 = scmp.eq.s32.totalorder %s24, 0
      %p107 = por %p105, %p106
      %p108 = scmp.ne.s32.totalorder %s100, %s102
      %p109 = scmp.eq.s32.totalorder %s29, 1
      %p110 = por %p108, %p109
      %p111 = scmp.ne.s32.totalorder %s102, %s103
      %p112 = scmp.eq.s32.totalorder %s29, 0
      %p113 = por %p111, %p112
      %p114 = scmp.ne.s32.totalorder %s102, %s103
      %p115 = scmp.eq.s32.totalorder %s30, 1
      %p116 = por %p114, %p115
      %p118 = scmp.ne.s32.totalorder %s103, %s117
      %p119 = scmp.eq.s32.totalorder %s30, 0
      %p120 = por %p118, %p119
      %s122 = sadd.s32 %s121, 1
      %p125 = scmp.eq.s32.totalorder %s24, 1
      %p126 = scmp.ne.s32.totalorder %s121, %s123
      %p127 = scmp.eq.s32.totalorder %s24, 0
      %p128 = por %p126, %p127
      %p129 = scmp.ne.s32.totalorder %s121, %s123
      %p130 = scmp.eq.s32.totalorder %s29, 1
      %p131 = por %p129, %p130
      %p132 = scmp.ne.s32.totalorder %s123, %s124
      %p133 = scmp.eq.s32.totalorder %s29, 0
      %p134 = por %p132, %p133
      %p135 = scmp.ne.s32.totalorder %s123, %s124
      %p136 = scmp.eq.s32.totalorder %s30, 1
      %p137 = por %p135, %p136
      %p139 = scmp.ne.s32.totalorder %s124, %s138
      %p140 = scmp.eq.s32.totalorder %s30, 0
      %p141 = por %p139, %p140
      %s143 = sadd.s32 %s142, 1
      %p146 = scmp.eq.s32.totalorder %s24, 1
      %p147 = scmp.ne.s32.totalorder %s142, %s144
      %p148 = scmp.eq.s32.totalorder %s24, 0
      %p149 = por %p147, %p148
      %p150 = scmp.ne.s32.totalorder %s142, %s144
      %p151 = scmp.eq.s32.totalorder %s29, 1
      %p152 = por %p150, %p151
      %p153 = scmp.ne.s32.totalorder %s144, %s145
      %p154 = scmp.eq.s32.totalorder %s29, 0
      %p155 = por %p153, %p154
      %p156 = scmp.ne.s32.totalorder %s144, %s145
      %p157 = scmp.eq.s32.totalorder %s30, 1
      %p158 = por %p156, %p157
      %p160 = scmp.ne.s32.totalorder %s145, %s159
      %p161 = scmp.eq.s32.totalorder %s30, 0
      %p162 = por %p160, %p161
      %s164 = sadd.s32 %s163, 1
      %p167 = scmp.eq.s32.totalorder %s24, 1
      %p168 = scmp.ne.s32.totalorder %s163, %s165
      %p169 = scmp.eq.s32.totalorder %s24, 0
      %p170 = por %p168, %p169
      %p171 = scmp.ne.s32.totalorder %s163, %s165
      %p172 = scmp.eq.s32.totalorder %s29, 1
      %p173 = por %p171, %p172
      %p174 = scmp.ne.s32.totalorder %s165, %s166
      %p175 = scmp.eq.s32.totalorder %s29, 0
      %p176 = por %p174, %p175
      %p177 = scmp.ne.s32.totalorder %s165, %s166
      %p178 = scmp.eq.s32.totalorder %s30, 1
      %p179 = por %p177, %p178
      %p181 = scmp.ne.s32.totalorder %s166, %s180
      %p182 = scmp.eq.s32.totalorder %s30, 0
      %p183 = por %p181, %p182
      %s185 = sadd.s32 %s184, 1
      %p188 = scmp.eq.s32.totalorder %s24, 1
      %p189 = scmp.ne.s32.totalorder %s184, %s186
      %p190 = scmp.eq.s32.totalorder %s24, 0
      %p191 = por %p189, %p190
      %p192 = scmp.ne.s32.totalorder %s184, %s186
      %p193 = scmp.eq.s32.totalorder %s29, 1
      %p194 = por %p192, %p193
      %p195 = scmp.ne.s32.totalorder %s186, %s187
      %p196 = scmp.eq.s32.totalorder %s29, 0
      %p197 = por %p195, %p196
      %p198 = scmp.ne.s32.totalorder %s186, %s187
      %p199 = scmp.eq.s32.totalorder %s30, 1
      %p200 = por %p198, %p199
      %p202 = scmp.ne.s32.totalorder %s187, %s201
      %p203 = scmp.eq.s32.totalorder %s30, 0
      %p204 = por %p202, %p203
      %s206 = sadd.s32 %s205, 1
      %p209 = scmp.eq.s32.totalorder %s24, 1
      %p210 = scmp.ne.s32.totalorder %s205, %s207
      %p211 = scmp.eq.s32.totalorder %s24, 0
      %p212 = por %p210, %p211
      %p213 = scmp.ne.s32.totalorder %s205, %s207
      %p214 = scmp.eq.s32.totalorder %s29, 1
      %p215 = por %p213, %p214
      %p216 = scmp.ne.s32.totalorder %s207, %s208
      %p217 = scmp.eq.s32.totalorder %s29, 0
      %p218 = por %p216, %p217
      %p219 = scmp.ne.s32.totalorder %s207, %s208
      %p220 = scmp.eq.s32.totalorder %s30, 1
      %p221 = por %p219, %p220
      %p223 = scmp.ne.s32.totalorder %s208, %s222
      %p224 = scmp.eq.s32.totalorder %s30, 0
      %p225 = por %p223, %p224
      %s227 = sadd.s32 %s226, 1
      %p230 = scmp.eq.s32.totalorder %s24, 1
      %p231 = scmp.ne.s32.totalorder %s226, %s228
      %p232 = scmp.eq.s32.totalorder %s24, 0
      %p233 = por %p231, %p232
      %p234 = scmp.ne.s32.totalorder %s226, %s228
      %p235 = scmp.eq.s32.totalorder %s29, 1
      %p236 = por %p234, %p235
      %p237 = scmp.ne.s32.totalorder %s228, %s229
      %p238 = scmp.eq.s32.totalorder %s29, 0
      %p239 = por %p237, %p238
      %p240 = scmp.ne.s32.totalorder %s228, %s229
      %p241 = scmp.eq.s32.totalorder %s30, 1
      %p242 = por %p240, %p241
      %p244 = scmp.ne.s32.totalorder %s229, %s243
      %p245 = scmp.eq.s32.totalorder %s30, 0
      %p246 = por %p244, %p245
      %s248 = sadd.s32 %s247, 1
      %p251 = scmp.eq.s32.totalorder %s24, 1
      %p252 = scmp.ne.s32.totalorder %s247, %s249
      %p253 = scmp.eq.s32.totalorder %s24, 0
      %p254 = por %p252, %p253
      %p255 = scmp.ne.s32.totalorder %s247, %s249
      %p256 = scmp.eq.s32.totalorder %s29, 1
      %p257 = por %p255, %p256
      %p258 = scmp.ne.s32.totalorder %s249, %s250
      %p259 = scmp.eq.s32.totalorder %s29, 0
      %p260 = por %p258, %p259
      %p261 = scmp.ne.s32.totalorder %s249, %s250
      %p262 = scmp.eq.s32.totalorder %s30, 1
      %p263 = por %p261, %p262
      %p265 = scmp.ne.s32.totalorder %s250, %s264
      %p266 = scmp.eq.s32.totalorder %s30, 0
      %p267 = por %p265, %p266
      %s268 = ssub.s32 %s24, %s31
      %p269 = scmp.eq.s32.totalorder %s268, 0
      %s271 = sadd.s32 %s270, 1
      %s272 = scalar_select %p269, %s270, %s271
      %p275 = pneg %p269
      %p276 = scmp.eq.s32.totalorder %s24, 1
      %p277 = por %p275, %p276
      %p278 = scmp.ne.s32.totalorder %s270, %s273
      %p279 = scmp.eq.s32.totalorder %s24, 0
      %p280 = por %p278, %p279
      %p281 = scmp.ne.s32.totalorder %s270, %s273
      %p282 = scmp.eq.s32.totalorder %s29, 1
      %p283 = por %p281, %p282
      %p284 = scmp.ne.s32.totalorder %s273, %s274
      %p285 = scmp.eq.s32.totalorder %s29, 0
      %p286 = por %p284, %p285
      %p287 = scmp.ne.s32.totalorder %s273, %s274
      %p288 = scmp.eq.s32.totalorder %s30, 1
      %p289 = por %p287, %p288
      %p291 = scmp.ne.s32.totalorder %s274, %s290
      %p292 = scmp.eq.s32.totalorder %s30, 0
      %p293 = por %p291, %p292
      %p294 = scmp.le.s32.totalorder 1, %s24
      %p295 = scmp.lt.s32.totalorder %s24, 3
      %p296 = pnand %p294, %p295
      %p297 = pneg %p296
      // Predicated region
      $region9: #{tpu_custom_call.1} parent=5 // pred_check
        _
      $region10: #{tpu_custom_call.1} parent=5 // pred_check_branch
        %299 = sbr.rel (%p296) target = $region12
      $region11: #{tpu_custom_call.1} parent=5 // pred_region
        %s300 = ssub.s32 %s24, 1
        // Predicated region
        $region13: #{tpu_custom_call.1} parent=11 // pred_check
          %p301 = pneg %p71
        $region14: #{tpu_custom_call.1} parent=11 // pred_check_branch
          %303 = sbr.rel (%p301) target = $region16
        $region15: #{tpu_custom_call.1} parent=11 // pred_region
          %s305 = ssub.s32 512, 512
          %306 = vsyncadd [#allocation3], %s305
          %s307 = sshll.u32 [#allocation2], 4
          %s308 = int_to_ptr.vmem [resolvable:$true] %s307
          %313 = dma.hbm_to_vmem [thread:$0]  %s1, 512, %s308, [#allocation3], 128, 128, 8
        $region16: #{tpu_custom_call.1} parent=11 // pred_fallthru
          _
        // Predicated region
        $region17: #{tpu_custom_call.1} parent=11 // pred_check
          %p314 = pneg %p92
        $region18: #{tpu_custom_call.1} parent=11 // pred_check_branch
          %316 = sbr.rel (%p314) target = $region20
        $region19: #{tpu_custom_call.1} parent=11 // pred_region
          %s318 = ssub.s32 16, 16
          %319 = vsyncadd [#allocation6], %s318
          %s321 = sshll.u32 [#allocation5], 4
          %s322 = int_to_ptr.vmem [resolvable:$true] %s321
          %324 = dma.hbm_to_vmem [thread:$0]  %s2, 16, %s322, [#allocation6]
        $region20: #{tpu_custom_call.1} parent=11 // pred_fallthru
          _
        // Predicated region
        $region21: #{tpu_custom_call.1} parent=11 // pred_check
          %p325 = pneg %p113
        $region22: #{tpu_custom_call.1} parent=11 // pred_check_branch
          %327 = sbr.rel (%p325) target = $region24
        $region23: #{tpu_custom_call.1} parent=11 // pred_region
          %s329 = ssub.s32 512, 512
          %330 = vsyncadd [#allocation6], %s329
          %s331 = sshll.u32 [#allocation7], 4
          %s332 = int_to_ptr.vmem [resolvable:$true] %s331
          %337 = dma.hbm_to_vmem [thread:$0]  %s3, 512, %s332, [#allocation6], 128, 128, 8
        $region24: #{tpu_custom_call.1} parent=11 // pred_fallthru
          _
        // Predicated region
        $region25: #{tpu_custom_call.1} parent=11 // pred_check
          %p338 = pneg %p134
        $region26: #{tpu_custom_call.1} parent=11 // pred_check_branch
          %340 = sbr.rel (%p338) target = $region28
        $region27: #{tpu_custom_call.1} parent=11 // pred_region
          %s342 = ssub.s32 16, 16
          %343 = vsyncadd [#allocation9], %s342
          %s345 = sshll.u32 [#allocation8], 4
          %s346 = int_to_ptr.vmem [resolvable:$true] %s345
          %348 = dma.hbm_to_vmem [thread:$0]  %s4, 16, %s346, [#allocation9]
        $region28: #{tpu_custom_call.1} parent=11 // pred_fallthru
          _
        // Predicated region
        $region29: #{tpu_custom_call.1} parent=11 // pred_check
          %p349 = pneg %p155
        $region30: #{tpu_custom_call.1} parent=11 // pred_check_branch
          %351 = sbr.rel (%p349) target = $region32
        $region31: #{tpu_custom_call.1} parent=11 // pred_region
          %s353 = ssub.s32 512, 512
          %354 = vsyncadd [#allocation9], %s353
          %s355 = sshll.u32 [#allocation10], 4
          %s356 = int_to_ptr.vmem [resolvable:$true] %s355
          %361 = dma.hbm_to_vmem [thread:$0]  %s5, 512, %s356, [#allocation9], 128, 128, 8
        $region32: #{tpu_custom_call.1} parent=11 // pred_fallthru
          _
        // Predicated region
        $region33: #{tpu_custom_call.1} parent=11 // pred_check
          %p362 = pneg %p176
        $region34: #{tpu_custom_call.1} parent=11 // pred_check_branch
          %364 = sbr.rel (%p362) target = $region36
        $region35: #{tpu_custom_call.1} parent=11 // pred_region
          %s366 = ssub.s32 16, 16
          %367 = vsyncadd [#allocation12], %s366
          %s369 = sshll.u32 [#allocation11], 4
          %s370 = int_to_ptr.vmem [resolvable:$true] %s369
          %372 = dma.hbm_to_vmem [thread:$0]  %s6, 16, %s370, [#allocation12]
        $region36: #{tpu_custom_call.1} parent=11 // pred_fallthru
          _
        // Predicated region
        $region37: #{tpu_custom_call.1} parent=11 // pred_check
          %p373 = pneg %p197
        $region38: #{tpu_custom_call.1} parent=11 // pred_check_branch
          %375 = sbr.rel (%p373) target = $region40
        $region39: #{tpu_custom_call.1} parent=11 // pred_region
          _
        $region40: #{tpu_custom_call.1} parent=11 // pred_fallthru
          _
        // Predicated region
        $region41: #{tpu_custom_call.1} parent=11 // pred_check
          %p376 = pneg %p218
        $region42: #{tpu_custom_call.1} parent=11 // pred_check_branch
          %378 = sbr.rel (%p376) target = $region44
        $region43: #{tpu_custom_call.1} parent=11 // pred_region
          %s380 = ssub.s32 16, 16
          %381 = vsyncadd [#allocation12], %s380
          %s383 = sshll.u32 [#allocation13], 4
          %s384 = int_to_ptr.vmem [resolvable:$true] %s383
          %386 = dma.hbm_to_vmem [thread:$0]  %s8, 16, %s384, [#allocation12]
        $region44: #{tpu_custom_call.1} parent=11 // pred_fallthru
          _
        // Predicated region
        $region45: #{tpu_custom_call.1} parent=11 // pred_check
          %p387 = pneg %p239
        $region46: #{tpu_custom_call.1} parent=11 // pred_check_branch
          %389 = sbr.rel (%p387) target = $region48
        $region47: #{tpu_custom_call.1} parent=11 // pred_region
          _
        $region48: #{tpu_custom_call.1} parent=11 // pred_fallthru
          _
        // Predicated region
        $region49: #{tpu_custom_call.1} parent=11 // pred_check
          %p390 = pneg %p260
        $region50: #{tpu_custom_call.1} parent=11 // pred_check_branch
          %392 = sbr.rel (%p390) target = $region52
        $region51: #{tpu_custom_call.1} parent=11 // pred_region
          _
        $region52: #{tpu_custom_call.1} parent=11 // pred_fallthru
          _
      $region12: #{tpu_custom_call.1} parent=5 // pred_fallthru
        _
      %p393 = scmp.lt.s32.totalorder %s24, 2
      // Predicated region
      $region53: #{tpu_custom_call.1} parent=5 // pred_check
        %p394 = pneg %p393
      $region54: #{tpu_custom_call.1} parent=5 // pred_check_branch
        %396 = sbr.rel (%p394) target = $region56
      $region55: #{tpu_custom_call.1} parent=5 // pred_region
        // Predicated region
        $region57: #{tpu_custom_call.1} parent=55 // pred_check
          %p397 = pneg %p44
        $region58: #{tpu_custom_call.1} parent=55 // pred_check_branch
          %399 = sbr.rel (%p397) target = $region60
        $region59: #{tpu_custom_call.1} parent=55 // pred_region
          %p400 = scmp.lt.s32.totalorder %s24, 1
          %s401 = scalar_select %p400, %s24, 1
          %s402 = smul.addr %s401, 8
          %s403 = scalar_lea.vmem %s0, %s402
        $region60: #{tpu_custom_call.1} parent=55 // pred_fallthru
          _
      $region56: #{tpu_custom_call.1} parent=5 // pred_fallthru
        _
      %p404 = scmp.le.s32.totalorder 1, %s24
      %p405 = scmp.lt.s32.totalorder %s24, 3
      %p406 = pnand %p404, %p405
      %p407 = pneg %p406
      // Predicated region
      $region61: #{tpu_custom_call.1} parent=5 // pred_check
        _
      $region62: #{tpu_custom_call.1} parent=5 // pred_check_branch
        %409 = sbr.rel (%p406) target = $region64
      $region63: #{tpu_custom_call.1} parent=5 // pred_region
        %s410 = ssub.s32 %s24, 1
        // Predicated region
        $region65: #{tpu_custom_call.1} parent=63 // pred_check
          %p411 = pneg %p71
        $region66: #{tpu_custom_call.1} parent=63 // pred_check_branch
          %413 = sbr.rel (%p411) target = $region68
        $region67: #{tpu_custom_call.1} parent=63 // pred_region
          %414 = dma.done [#allocation3], 512
        $region68: #{tpu_custom_call.1} parent=63 // pred_fallthru
          _
        // Predicated region
        $region69: #{tpu_custom_call.1} parent=63 // pred_check
          %p415 = pneg %p92
        $region70: #{tpu_custom_call.1} parent=63 // pred_check_branch
          %417 = sbr.rel (%p415) target = $region72
        $region71: #{tpu_custom_call.1} parent=63 // pred_region
          %418 = dma.done [#allocation6], 16
        $region72: #{tpu_custom_call.1} parent=63 // pred_fallthru
          _
        // Predicated region
        $region73: #{tpu_custom_call.1} parent=63 // pred_check
          %p419 = pneg %p113
        $region74: #{tpu_custom_call.1} parent=63 // pred_check_branch
          %421 = sbr.rel (%p419) target = $region76
        $region75: #{tpu_custom_call.1} parent=63 // pred_region
          %422 = dma.done [#allocation6], 512
        $region76: #{tpu_custom_call.1} parent=63 // pred_fallthru
          _
        // Predicated region
        $region77: #{tpu_custom_call.1} parent=63 // pred_check
          %p423 = pneg %p134
        $region78: #{tpu_custom_call.1} parent=63 // pred_check_branch
          %425 = sbr.rel (%p423) target = $region80
        $region79: #{tpu_custom_call.1} parent=63 // pred_region
          %426 = dma.done [#allocation9], 16
        $region80: #{tpu_custom_call.1} parent=63 // pred_fallthru
          _
        // Predicated region
        $region81: #{tpu_custom_call.1} parent=63 // pred_check
          %p427 = pneg %p155
        $region82: #{tpu_custom_call.1} parent=63 // pred_check_branch
          %429 = sbr.rel (%p427) target = $region84
        $region83: #{tpu_custom_call.1} parent=63 // pred_region
          %430 = dma.done [#allocation9], 512
        $region84: #{tpu_custom_call.1} parent=63 // pred_fallthru
          _
        // Predicated region
        $region85: #{tpu_custom_call.1} parent=63 // pred_check
          %p431 = pneg %p176
        $region86: #{tpu_custom_call.1} parent=63 // pred_check_branch
          %433 = sbr.rel (%p431) target = $region88
        $region87: #{tpu_custom_call.1} parent=63 // pred_region
          %434 = dma.done [#allocation12], 16
        $region88: #{tpu_custom_call.1} parent=63 // pred_fallthru
          _
        // Predicated region
        $region89: #{tpu_custom_call.1} parent=63 // pred_check
          %p435 = pneg %p218
        $region90: #{tpu_custom_call.1} parent=63 // pred_check_branch
          %437 = sbr.rel (%p435) target = $region92
        $region91: #{tpu_custom_call.1} parent=63 // pred_region
          %438 = dma.done [#allocation12], 16
        $region92: #{tpu_custom_call.1} parent=63 // pred_fallthru
          _
        %p439 = scmp.lt.s32.totalorder %s29, 1
        %s440 = scalar_select %p439, %s29, 1
        %s441 = smul.addr %s440, 8
        %s442 = scalar_lea.vmem %s0, %s441
        %p443 = pneg %p50
        %p444 = pneg %p47
        %p445 = pneg %p71
        %p446 = pneg %p68
        %p447 = pneg %p92
        %p448 = pneg %p89
        %p449 = pneg %p113
        %p450 = pneg %p110
        %p451 = pneg %p134
        %p452 = pneg %p131
        %p453 = pneg %p155
        %p454 = pneg %p152
        %p455 = pneg %p176
        %p456 = pneg %p173
        %p457 = pneg %p197
        %p458 = pneg %p194
        %p459 = pneg %p218
        %p460 = pneg %p215
        %p461 = pneg %p239
        %p462 = pneg %p236
        %p463 = pneg %p260
        %p464 = pneg %p257
        %p465 = pneg %p286
        %p466 = pneg %p283
        %s467 = sand.u32 %s273, 1
        %s468 = scalar_lea.sflag [#allocation4], %s467
        %s469 = sand.u32 %s273, 1
        %s470 = smul.addr %s469, 8
        %s471 = scalar_lea.vmem [#allocation14], %s470
        %p472 = scmp.lt.s32.totalorder %s29, 1
        %s473 = scalar_select %p472, %s29, 1
        %s474 = smul.addr %s473, 8
        %s475 = scalar_lea.vmem %s0, %s474
        %v476 = vld [vmem:[%s475] sm:$0xff]
        %v477 = vld [vmem:[#allocation2] sm:$0xff]
        %v478 = vld [vmem:[#allocation2 + $0x8] sm:$0xff]
        %v479 = vld [vmem:[#allocation2 + $0x10] sm:$0xff]
        %v480 = vld [vmem:[#allocation2 + $0x18] sm:$0xff]
        %v481 = vld [vmem:[#allocation5] sm:$0x1]
        %v482 = vld [vmem:[#allocation7] sm:$0xff]
        %v483 = vld [vmem:[#allocation7 + $0x8] sm:$0xff]
        %v484 = vld [vmem:[#allocation7 + $0x10] sm:$0xff]
        %v485 = vld [vmem:[#allocation7 + $0x18] sm:$0xff]
        %v486 = vld [vmem:[#allocation8] sm:$0x1]
        %v488 = vlaneseq
        %v489 = vshrl.u32 %v488, 7
        %v490 = vsub.s32 0, %v489
        %v491 = vrot.slane %v481, %v490
        %vm493 = vcmask 261120
        %v495 = vsel %vm493, %v476, 0
        %497 = vmatprep.subr.mxu0 0.0
        %498 = vmatpush1.msra.mxu0 0.0
        %499 = vmatprep.subr.mxu0 0.0
        %500 = vmatpush1.msra.mxu0 0.0
        %501 = vmatprep.subr.mxu0 0.0
        %502 = vmatpush1.msra.mxu0 0.0
        %503 = vmatprep.subr.mxu0 0.0
        %504 = vmatpush1.msra.mxu0 0.0
        %505 = vmatprep.subr.mxu0 0.0
        %506 = vmatpush1.msra.mxu0 0.0
        %507 = vmatprep.subr.mxu0 0.0
        %508 = vmatpush1.msra.mxu0 0.0
        %509 = vmatprep.subr.mxu0 0.0
        %510 = vmatpush1.msra.mxu0 0.0
        %511 = vmatprep.subr.mxu0 0.0
        %512 = vmatpush1.msra.mxu0 0.0
        %513 = vmatprep.subr.mxu0 0.0
        %514 = vmatpush1.msra.mxu0 0.0
        %515 = vmatprep.subr.mxu0 0.0
        %516 = vmatpush1.msra.mxu0 0.0
        %517 = vmatprep.subr.mxu0 0.0
        %518 = vmatpush1.msra.mxu0 0.0
        %519 = vmatprep.subr.mxu0 0.0
        %520 = vmatpush1.msra.mxu0 0.0
        %521 = vmatprep.subr.mxu0 0.0
        %522 = vmatpush1.msra.mxu0 %v480
        %523 = vmatprep.subr.mxu0 0.0
        %524 = vmatpush1.msra.mxu0 %v479
        %525 = vmatprep.subr.mxu0 0.0
        %526 = vmatpush1.msra.mxu0 %v478
        %527 = vmatprep.subr.mxu0 0.0
        %528 = vmatpush1.msra.mxu0 %v477
        %529 = vmatprep.subr.mxu0 0.0
        %530 = vmatpush2.msra.mxu0 0.0
        %531 = vmatprep.subr.mxu0 0.0
        %532 = vmatpush2.msra.mxu0 0.0
        %533 = vmatprep.subr.mxu0 0.0
        %534 = vmatpush2.msra.mxu0 0.0
        %535 = vmatprep.subr.mxu0 0.0
        %536 = vmatpush2.msra.mxu0 0.0
        %537 = vmatprep.subr.mxu0 0.0
        %538 = vmatpush2.msra.mxu0 0.0
        %539 = vmatprep.subr.mxu0 0.0
        %540 = vmatpush2.msra.mxu0 0.0
        %541 = vmatprep.subr.mxu0 0.0
        %542 = vmatpush2.msra.mxu0 0.0
        %543 = vmatprep.subr.mxu0 0.0
        %544 = vmatpush2.msra.mxu0 0.0
        %545 = vmatprep.subr.mxu0 0.0
        %546 = vmatpush2.msra.mxu0 0.0
        %547 = vmatprep.subr.mxu0 0.0
        %548 = vmatpush2.msra.mxu0 0.0
        %549 = vmatprep.subr.mxu0 0.0
        %550 = vmatpush2.msra.mxu0 0.0
        %551 = vmatprep.subr.mxu0 0.0
        %552 = vmatpush2.msra.mxu0 0.0
        %553 = vmatprep.subr.mxu0 0.0
        %554 = vmatpush2.msra.mxu0 0.0
        %555 = vmatprep.subr.mxu0 0.0
        %556 = vmatpush2.msra.mxu0 0.0
        %557 = vmatprep.subr.mxu0 0.0
        %558 = vmatpush2.msra.mxu0 0.0
        %559 = vmatprep.subr.mxu0 0.0
        %560 = vmatpush2.msra.mxu0 0.0
        %561 = vmatprep.mubr.f32.mxu0 0.0
        %562 = vmatmul.mubr.f32.gmra.mxu0 %v495
        %v563 = vpop.f32.mrf.mxu0
        %v564 = vadd.f32 %v491, %v563
        %v565 = vpop.f32.mrf.mxu0
        %566 = vdwg.mxu0
        %v567 = vmax.f32 %v564, 0.0
        %v569 = vlaneseq
        %v570 = vshrl.u32 %v569, 7
        %v571 = vsub.s32 0, %v570
        %v572 = vrot.slane %v486, %v571
        %v575 = vsel %vm493, %v567, 0
        %577 = vmatprep.subr.mxu0 0.0
        %578 = vmatpush1.msra.mxu0 0.0
        %579 = vmatprep.subr.mxu0 0.0
        %580 = vmatpush1.msra.mxu0 0.0
        %581 = vmatprep.subr.mxu0 0.0
        %582 = vmatpush1.msra.mxu0 0.0
        %583 = vmatprep.subr.mxu0 0.0
        %584 = vmatpush1.msra.mxu0 0.0
        %585 = vmatprep.subr.mxu0 0.0
        %586 = vmatpush1.msra.mxu0 0.0
        %587 = vmatprep.subr.mxu0 0.0
        %588 = vmatpush1.msra.mxu0 0.0
        %589 = vmatprep.subr.mxu0 0.0
        %590 = vmatpush1.msra.mxu0 0.0
        %591 = vmatprep.subr.mxu0 0.0
        %592 = vmatpush1.msra.mxu0 0.0
        %593 = vmatprep.subr.mxu0 0.0
        %594 = vmatpush1.msra.mxu0 0.0
        %595 = vmatprep.subr.mxu0 0.0
        %596 = vmatpush1.msra.mxu0 0.0
        %597 = vmatprep.subr.mxu0 0.0
        %598 = vmatpush1.msra.mxu0 0.0
        %599 = vmatprep.subr.mxu0 0.0
        %600 = vmatpush1.msra.mxu0 0.0
        %601 = vmatprep.subr.mxu0 0.0
        %602 = vmatpush1.msra.mxu0 %v485
        %603 = vmatprep.subr.mxu0 0.0
        %604 = vmatpush1.msra.mxu0 %v484
        %605 = vmatprep.subr.mxu0 0.0
        %606 = vmatpush1.msra.mxu0 %v483
        %607 = vmatprep.subr.mxu0 0.0
        %608 = vmatpush1.msra.mxu0 %v482
        %609 = vmatprep.subr.mxu0 0.0
        %610 = vmatpush2.msra.mxu0 0.0
        %611 = vmatprep.subr.mxu0 0.0
        %612 = vmatpush2.msra.mxu0 0.0
        %613 = vmatprep.subr.mxu0 0.0
        %614 = vmatpush2.msra.mxu0 0.0
        %615 = vmatprep.subr.mxu0 0.0
        %616 = vmatpush2.msra.mxu0 0.0
        %617 = vmatprep.subr.mxu0 0.0
        %618 = vmatpush2.msra.mxu0 0.0
        %619 = vmatprep.subr.mxu0 0.0
        %620 = vmatpush2.msra.mxu0 0.0
        %621 = vmatprep.subr.mxu0 0.0
        %622 = vmatpush2.msra.mxu0 0.0
        %623 = vmatprep.subr.mxu0 0.0
        %624 = vmatpush2.msra.mxu0 0.0
        %625 = vmatprep.subr.mxu0 0.0
        %626 = vmatpush2.msra.mxu0 0.0
        %627 = vmatprep.subr.mxu0 0.0
        %628 = vmatpush2.msra.mxu0 0.0
        %629 = vmatprep.subr.mxu0 0.0
        %630 = vmatpush2.msra.mxu0 0.0
        %631 = vmatprep.subr.mxu0 0.0
        %632 = vmatpush2.msra.mxu0 0.0
        %633 = vmatprep.subr.mxu0 0.0
        %634 = vmatpush2.msra.mxu0 0.0
        %635 = vmatprep.subr.mxu0 0.0
        %636 = vmatpush2.msra.mxu0 0.0
        %637 = vmatprep.subr.mxu0 0.0
        %638 = vmatpush2.msra.mxu0 0.0
        %639 = vmatprep.subr.mxu0 0.0
        %640 = vmatpush2.msra.mxu0 0.0
        %641 = vmatprep.mubr.f32.mxu0 0.0
        %642 = vmatmul.mubr.f32.gmra.mxu0 %v575
        %v643 = vpop.f32.mrf.mxu0
        %v644 = vadd.f32 %v572, %v643
        %v645 = vpop.f32.mrf.mxu0
        %646 = vdwg.mxu0
        %v647 = vadd.f32 %v644, %v564
        %v648 = vadd.f32 %v647, %v476
        %v649 = vld [vmem:[#allocation10] sm:$0xff]
        %v650 = vld [vmem:[#allocation10 + $0x8] sm:$0xff]
        %v651 = vld [vmem:[#allocation10 + $0x10] sm:$0xff]
        %v652 = vld [vmem:[#allocation10 + $0x18] sm:$0xff]
        %v653 = vld [vmem:[#allocation11] sm:$0x1]
        %v654 = vld [vmem:[%s7] sm:$0xff]
        %v655 = vld [vmem:[%s7 + $0x8] sm:$0xff]
        %v656 = vld [vmem:[%s7 + $0x10] sm:$0xff]
        %v657 = vld [vmem:[%s7 + $0x18] sm:$0xff]
        %v658 = vld [vmem:[%s7 + $0x20] sm:$0xff]
        %v659 = vld [vmem:[%s7 + $0x28] sm:$0xff]
        %v660 = vld [vmem:[#allocation13] sm:$0x1]
        %v662 = vlaneseq
        %v663 = vshrl.u32 %v662, 7
        %v664 = vsub.s32 0, %v663
        %v665 = vrot.slane %v653, %v664
        %v668 = vsel %vm493, %v648, 0
        %670 = vmatprep.subr.mxu0 0.0
        %671 = vmatpush1.msra.mxu0 0.0
        %672 = vmatprep.subr.mxu0 0.0
        %673 = vmatpush1.msra.mxu0 0.0
        %674 = vmatprep.subr.mxu0 0.0
        %675 = vmatpush1.msra.mxu0 0.0
        %676 = vmatprep.subr.mxu0 0.0
        %677 = vmatpush1.msra.mxu0 0.0
        %678 = vmatprep.subr.mxu0 0.0
        %679 = vmatpush1.msra.mxu0 0.0
        %680 = vmatprep.subr.mxu0 0.0
        %681 = vmatpush1.msra.mxu0 0.0
        %682 = vmatprep.subr.mxu0 0.0
        %683 = vmatpush1.msra.mxu0 0.0
        %684 = vmatprep.subr.mxu0 0.0
        %685 = vmatpush1.msra.mxu0 0.0
        %686 = vmatprep.subr.mxu0 0.0
        %687 = vmatpush1.msra.mxu0 0.0
        %688 = vmatprep.subr.mxu0 0.0
        %689 = vmatpush1.msra.mxu0 0.0
        %690 = vmatprep.subr.mxu0 0.0
        %691 = vmatpush1.msra.mxu0 0.0
        %692 = vmatprep.subr.mxu0 0.0
        %693 = vmatpush1.msra.mxu0 0.0
        %694 = vmatprep.subr.mxu0 0.0
        %695 = vmatpush1.msra.mxu0 %v652
        %696 = vmatprep.subr.mxu0 0.0
        %697 = vmatpush1.msra.mxu0 %v651
        %698 = vmatprep.subr.mxu0 0.0
        %699 = vmatpush1.msra.mxu0 %v650
        %700 = vmatprep.subr.mxu0 0.0
        %701 = vmatpush1.msra.mxu0 %v649
        %702 = vmatprep.subr.mxu0 0.0
        %703 = vmatpush2.msra.mxu0 0.0
        %704 = vmatprep.subr.mxu0 0.0
        %705 = vmatpush2.msra.mxu0 0.0
        %706 = vmatprep.subr.mxu0 0.0
        %707 = vmatpush2.msra.mxu0 0.0
        %708 = vmatprep.subr.mxu0 0.0
        %709 = vmatpush2.msra.mxu0 0.0
        %710 = vmatprep.subr.mxu0 0.0
        %711 = vmatpush2.msra.mxu0 0.0
        %712 = vmatprep.subr.mxu0 0.0
        %713 = vmatpush2.msra.mxu0 0.0
        %714 = vmatprep.subr.mxu0 0.0
        %715 = vmatpush2.msra.mxu0 0.0
        %716 = vmatprep.subr.mxu0 0.0
        %717 = vmatpush2.msra.mxu0 0.0
        %718 = vmatprep.subr.mxu0 0.0
        %719 = vmatpush2.msra.mxu0 0.0
        %720 = vmatprep.subr.mxu0 0.0
        %721 = vmatpush2.msra.mxu0 0.0
        %722 = vmatprep.subr.mxu0 0.0
        %723 = vmatpush2.msra.mxu0 0.0
        %724 = vmatprep.subr.mxu0 0.0
        %725 = vmatpush2.msra.mxu0 0.0
        %726 = vmatprep.subr.mxu0 0.0
        %727 = vmatpush2.msra.mxu0 0.0
        %728 = vmatprep.subr.mxu0 0.0
        %729 = vmatpush2.msra.mxu0 0.0
        %730 = vmatprep.subr.mxu0 0.0
        %731 = vmatpush2.msra.mxu0 0.0
        %732 = vmatprep.subr.mxu0 0.0
        %733 = vmatpush2.msra.mxu0 0.0
        %734 = vmatprep.mubr.f32.mxu0 0.0
        %735 = vmatmul.mubr.f32.gmra.mxu0 %v668
        %v736 = vpop.f32.mrf.mxu0
        %v737 = vadd.f32 %v665, %v736
        %v738 = vpop.f32.mrf.mxu0
        %739 = vdwg.mxu0
        %v740 = vmax.f32 %v737, 0.0
        %v742 = vlaneseq
        %v743 = vshrl.u32 %v742, 7
        %v744 = vsub.s32 0, %v743
        %v745 = vrot.slane %v660, %v744
        %vm747 = vcmask 392192
        %v749 = vsel %vm747, %v740, 0
        %751 = vmatprep.subr.mxu0 0.0
        %752 = vmatpush1.msra.mxu0 0.0
        %753 = vmatprep.subr.mxu0 0.0
        %754 = vmatpush1.msra.mxu0 0.0
        %755 = vmatprep.subr.mxu0 0.0
        %756 = vmatpush1.msra.mxu0 0.0
        %757 = vmatprep.subr.mxu0 0.0
        %758 = vmatpush1.msra.mxu0 0.0
        %759 = vmatprep.subr.mxu0 0.0
        %760 = vmatpush1.msra.mxu0 0.0
        %761 = vmatprep.subr.mxu0 0.0
        %762 = vmatpush1.msra.mxu0 0.0
        %763 = vmatprep.subr.mxu0 0.0
        %764 = vmatpush1.msra.mxu0 0.0
        %765 = vmatprep.subr.mxu0 0.0
        %766 = vmatpush1.msra.mxu0 0.0
        %767 = vmatprep.subr.mxu0 0.0
        %768 = vmatpush1.msra.mxu0 0.0
        %769 = vmatprep.subr.mxu0 0.0
        %770 = vmatpush1.msra.mxu0 0.0
        %771 = vmatprep.subr.mxu0 0.0
        %772 = vmatpush1.msra.mxu0 %v659
        %773 = vmatprep.subr.mxu0 0.0
        %774 = vmatpush1.msra.mxu0 %v658
        %775 = vmatprep.subr.mxu0 0.0
        %776 = vmatpush1.msra.mxu0 %v657
        %777 = vmatprep.subr.mxu0 0.0
        %778 = vmatpush1.msra.mxu0 %v656
        %779 = vmatprep.subr.mxu0 0.0
        %780 = vmatpush1.msra.mxu0 %v655
        %781 = vmatprep.subr.mxu0 0.0
        %782 = vmatpush1.msra.mxu0 %v654
        %783 = vmatprep.subr.mxu0 0.0
        %784 = vmatpush2.msra.mxu0 0.0
        %785 = vmatprep.subr.mxu0 0.0
        %786 = vmatpush2.msra.mxu0 0.0
        %787 = vmatprep.subr.mxu0 0.0
        %788 = vmatpush2.msra.mxu0 0.0
        %789 = vmatprep.subr.mxu0 0.0
        %790 = vmatpush2.msra.mxu0 0.0
        %791 = vmatprep.subr.mxu0 0.0
        %792 = vmatpush2.msra.mxu0 0.0
        %793 = vmatprep.subr.mxu0 0.0
        %794 = vmatpush2.msra.mxu0 0.0
        %795 = vmatprep.subr.mxu0 0.0
        %796 = vmatpush2.msra.mxu0 0.0
        %797 = vmatprep.subr.mxu0 0.0
        %798 = vmatpush2.msra.mxu0 0.0
        %799 = vmatprep.subr.mxu0 0.0
        %800 = vmatpush2.msra.mxu0 0.0
        %801 = vmatprep.subr.mxu0 0.0
        %802 = vmatpush2.msra.mxu0 0.0
        %803 = vmatprep.subr.mxu0 0.0
        %804 = vmatpush2.msra.mxu0 0.0
        %805 = vmatprep.subr.mxu0 0.0
        %806 = vmatpush2.msra.mxu0 0.0
        %807 = vmatprep.subr.mxu0 0.0
        %808 = vmatpush2.msra.mxu0 0.0
        %809 = vmatprep.subr.mxu0 0.0
        %810 = vmatpush2.msra.mxu0 0.0
        %811 = vmatprep.subr.mxu0 0.0
        %812 = vmatpush2.msra.mxu0 0.0
        %813 = vmatprep.subr.mxu0 0.0
        %814 = vmatpush2.msra.mxu0 0.0
        %815 = vmatprep.mubr.f32.mxu0 0.0
        %816 = vmatmul.mubr.f32.gmra.mxu0 %v749
        %v817 = vpop.f32.mrf.mxu0
        %v818 = vadd.f32 %v745, %v817
        %v819 = vpop.f32.mrf.mxu0
        %820 = vdwg.mxu0
        %v821 = vadd.f32 %v818, %v737
        %v822 = vld [vmem:[%s9] sm:$0xff]
        %v823 = vld [vmem:[%s9 + $0x8] sm:$0xff]
        %v824 = vld [vmem:[%s9 + $0x10] sm:$0xff]
        %v825 = vld [vmem:[%s9 + $0x18] sm:$0xff]
        %v826 = vld [vmem:[%s9 + $0x20] sm:$0xff]
        %v827 = vld [vmem:[%s9 + $0x28] sm:$0xff]
        %v828 = vld [vmem:[%s10] sm:$0x1]
        %v830 = vlaneseq
        %v831 = vshrl.u32 %v830, 7
        %v832 = vsub.s32 0, %v831
        %v833 = vrot.slane %v828, %v832
        %v836 = vsel %vm747, %v821, 0
        %838 = vmatprep.subr.mxu0 0.0
        %839 = vmatpush1.msra.mxu0 0.0
        %840 = vmatprep.subr.mxu0 0.0
        %841 = vmatpush1.msra.mxu0 0.0
        %842 = vmatprep.subr.mxu0 0.0
        %843 = vmatpush1.msra.mxu0 0.0
        %844 = vmatprep.subr.mxu0 0.0
        %845 = vmatpush1.msra.mxu0 0.0
        %846 = vmatprep.subr.mxu0 0.0
        %847 = vmatpush1.msra.mxu0 0.0
        %848 = vmatprep.subr.mxu0 0.0
        %849 = vmatpush1.msra.mxu0 0.0
        %850 = vmatprep.subr.mxu0 0.0
        %851 = vmatpush1.msra.mxu0 0.0
        %852 = vmatprep.subr.mxu0 0.0
        %853 = vmatpush1.msra.mxu0 0.0
        %854 = vmatprep.subr.mxu0 0.0
        %855 = vmatpush1.msra.mxu0 0.0
        %856 = vmatprep.subr.mxu0 0.0
        %857 = vmatpush1.msra.mxu0 0.0
        %858 = vmatprep.subr.mxu0 0.0
        %859 = vmatpush1.msra.mxu0 %v827
        %860 = vmatprep.subr.mxu0 0.0
        %861 = vmatpush1.msra.mxu0 %v826
        %862 = vmatprep.subr.mxu0 0.0
        %863 = vmatpush1.msra.mxu0 %v825
        %864 = vmatprep.subr.mxu0 0.0
        %865 = vmatpush1.msra.mxu0 %v824
        %866 = vmatprep.subr.mxu0 0.0
        %867 = vmatpush1.msra.mxu0 %v823
        %868 = vmatprep.subr.mxu0 0.0
        %869 = vmatpush1.msra.mxu0 %v822
        %870 = vmatprep.subr.mxu0 0.0
        %871 = vmatpush2.msra.mxu0 0.0
        %872 = vmatprep.subr.mxu0 0.0
        %873 = vmatpush2.msra.mxu0 0.0
        %874 = vmatprep.subr.mxu0 0.0
        %875 = vmatpush2.msra.mxu0 0.0
        %876 = vmatprep.subr.mxu0 0.0
        %877 = vmatpush2.msra.mxu0 0.0
        %878 = vmatprep.subr.mxu0 0.0
        %879 = vmatpush2.msra.mxu0 0.0
        %880 = vmatprep.subr.mxu0 0.0
        %881 = vmatpush2.msra.mxu0 0.0
        %882 = vmatprep.subr.mxu0 0.0
        %883 = vmatpush2.msra.mxu0 0.0
        %884 = vmatprep.subr.mxu0 0.0
        %885 = vmatpush2.msra.mxu0 0.0
        %886 = vmatprep.subr.mxu0 0.0
        %887 = vmatpush2.msra.mxu0 0.0
        %888 = vmatprep.subr.mxu0 0.0
        %889 = vmatpush2.msra.mxu0 0.0
        %890 = vmatprep.subr.mxu0 0.0
        %891 = vmatpush2.msra.mxu0 0.0
        %892 = vmatprep.subr.mxu0 0.0
        %893 = vmatpush2.msra.mxu0 0.0
        %894 = vmatprep.subr.mxu0 0.0
        %895 = vmatpush2.msra.mxu0 0.0
        %896 = vmatprep.subr.mxu0 0.0
        %897 = vmatpush2.msra.mxu0 0.0
        %898 = vmatprep.subr.mxu0 0.0
        %899 = vmatpush2.msra.mxu0 0.0
        %900 = vmatprep.subr.mxu0 0.0
        %901 = vmatpush2.msra.mxu0 0.0
        %902 = vmatprep.mubr.f32.mxu0 0.0
        %903 = vmatmul.mubr.f32.gmra.mxu0 %v836
        %v904 = vpop.f32.mrf.mxu0
        %v905 = vadd.f32 %v833, %v904
        %v906 = vpop.f32.mrf.mxu0
        %907 = vdwg.mxu0
        %vm908 = vcmask 130048
        %909 = vst.msk [vmem:[%s471] sm:$0xff] %vm908, %v905
        %s910 = sand.u32 %s273, 1
        %s911 = scalar_lea.sflag [#allocation4], %s910
        %s912 = sand.u32 %s273, 1
        %s913 = smul.addr %s912, 8
        %s914 = scalar_lea.vmem [#allocation14], %s913
        // Predicated region
        $region93: #{tpu_custom_call.1} parent=63 // pred_check
          %p915 = pneg %p283
        $region94: #{tpu_custom_call.1} parent=63 // pred_check_branch
          %917 = sbr.rel (%p915) target = $region96
        $region95: #{tpu_custom_call.1} parent=63 // pred_region
          %s919 = ssub.s32 128, 128
          %920 = vsyncadd %s911, %s919
          %s921 = smul.addr %s29, 128
          %s922 = scalar_lea.hbm %s11, %s921
          %s924 = sshll.u32 %s914, 4
          %s925 = int_to_ptr.vmem [resolvable:$true] %s924
          %927 = dma.vmem_to_hbm [thread:$0]  %s925, 128, %s922, %s911
        $region96: #{tpu_custom_call.1} parent=63 // pred_fallthru
          _
      $region64: #{tpu_custom_call.1} parent=5 // pred_fallthru
        _
      %p928 = scmp.le.s32.totalorder 2, %s24
      // Predicated region
      $region97: #{tpu_custom_call.1} parent=5 // pred_check
        %p929 = pneg %p928
      $region98: #{tpu_custom_call.1} parent=5 // pred_check_branch
        %931 = sbr.rel (%p929) target = $region100
      $region99: #{tpu_custom_call.1} parent=5 // pred_region
        %s932 = ssub.s32 %s24, 2
        // Predicated region
        $region101: #{tpu_custom_call.1} parent=99 // pred_check
          %p933 = pneg %p289
        $region102: #{tpu_custom_call.1} parent=99 // pred_check_branch
          %935 = sbr.rel (%p933) target = $region104
        $region103: #{tpu_custom_call.1} parent=99 // pred_region
          %s936 = sand.u32 %s274, 1
          %s937 = scalar_lea.sflag [#allocation4], %s936
          %s938 = sand.u32 %s274, 1
          %s939 = smul.addr %s938, 8
          %s940 = scalar_lea.vmem [#allocation14], %s939
          %941 = dma.done %s937, 128
        $region104: #{tpu_custom_call.1} parent=99 // pred_fallthru
          _
      $region100: #{tpu_custom_call.1} parent=5 // pred_fallthru
        _
    $region6: #{tpu_custom_call.1} parent=1 // loop_footer
      %s28 = sadd.s32 1, %s24
    $region7: #{tpu_custom_call.1} parent=1 // loop_footer_branch
      %23 = sbr.rel target = $region3
    $region8: #{tpu_custom_call.1} parent=1 // loop_exit
      _
    %942 = vsyncpa [#allocation3], 1
    %s943 = scalar_lea.sflag [#allocation3], 1
    %944 = vsyncpa %s943, 1
    %945 = vsyncpa [#allocation6], 1
    %946 = vsyncpa [#allocation9], 1
    %947 = vsyncpa [#allocation12], 1
    %948 = vsyncpa [#allocation4], 1
    %s949 = scalar_lea.sflag [#allocation4], 1
    %950 = vsyncpa %s949, 1

// kernel: tpu_custom_call.1
$region0: #{tpu_custom_call.1}
  #allocation0 [shape = 'u32[]', space=smem, size = 0x4, offset = 0x4, fixed_abs, tag = 'smem constant byte address 0x4 - core index']
  #allocation1 [shape = 'u32[144,128]{1,0:T(1,128)}', space=vmem, size = 0x12000, scoped, tag = 'internal scratch']
  %s0 = inlined_call_operand.vmem [shape: f32[16,32], index: 0, kind: input, shape index: {}]
  %s1 = inlined_call_operand.hbm [shape: f32[32,32], index: 1, kind: input, shape index: {}]
  %s2 = inlined_call_operand.hbm [shape: f32[1,32], index: 2, kind: input, shape index: {}]
  %s3 = inlined_call_operand.hbm [shape: f32[32,32], index: 3, kind: input, shape index: {}]
  %s4 = inlined_call_operand.hbm [shape: f32[1,32], index: 4, kind: input, shape index: {}]
  %s5 = inlined_call_operand.hbm [shape: f32[32,48], index: 5, kind: input, shape index: {}]
  %s6 = inlined_call_operand.hbm [shape: f32[1,48], index: 6, kind: input, shape index: {}]
  %s7 = inlined_call_operand.vmem [shape: f32[48,48], index: 7, kind: input, shape index: {}]
  %s8 = inlined_call_operand.hbm [shape: f32[1,48], index: 8, kind: input, shape index: {}]
  %s9 = inlined_call_operand.vmem [shape: f32[48,16], index: 9, kind: input, shape index: {}]
  %s10 = inlined_call_operand.vmem [shape: f32[1,16], index: 10, kind: input, shape index: {}]
  %s11 = inlined_call_operand.hbm [shape: f32[16,16], index: 11, kind: output, shape index: {}]
  %s12 = sld [smem:[#allocation0]]
  $region105: #{tpu_custom_call.1} parent=0
    _
  %s14 = ssub.s32 1, %s12
  %s15 = scalar_select 0, %s14, %s12
  $region1: #{tpu_custom_call.1} parent=0
    #allocation2 [shape = 'u8[16384]{0}', space=vmem, size = 0x4000, scoped, tag = 'input window, operand 1, single buffered']
    #allocation3 [shape = 's32[2]{0}', space=sflag, size = 0x8, scoped, tag = 'scoped memory for tpu_custom_call.1']
    #allocation4 [shape = 's32[2]{0}', space=sflag, size = 0x8, scoped, tag = 'scoped memory for tpu_custom_call.1']
    #allocation5 [shape = 'u8[512]{0}', space=vmem, size = 0x400, scoped, tag = 'input window, operand 2, single buffered']
    #allocation6 [shape = 's32[1]{0}', space=sflag, size = 0x4, scoped, tag = 'scoped memory for tpu_custom_call.1']
    #allocation7 [shape = 'u8[16384]{0}', space=vmem, size = 0x4000, scoped, tag = 'input window, operand 3, single buffered']
    #allocation8 [shape = 'u8[512]{0}', space=vmem, size = 0x400, scoped, tag = 'input window, operand 4, single buffered']
    #allocation9 [shape = 's32[1]{0}', space=sflag, size = 0x4, scoped, tag = 'scoped memory for tpu_custom_call.1']
    #allocation10 [shape = 'u8[16384]{0}', space=vmem, size = 0x4000, scoped, tag = 'input window, operand 5, single buffered']
    #allocation11 [shape = 'u8[512]{0}', space=vmem, size = 0x400, scoped, tag = 'input window, operand 6, single buffered']
    #allocation12 [shape = 's32[1]{0}', space=sflag, size = 0x4, scoped, tag = 'scoped memory for tpu_custom_call.1']
    #allocation13 [shape = 'u8[512]{0}', space=vmem, size = 0x400, scoped, tag = 'input window, operand 8, single buffered']
    #allocation14 [shape = 'u8[8192]{0}', space=vmem, size = 0x2000, scoped, tag = 'output window, operand 0']
    %16 = vsyncpa [#allocation3], 0
    %17 = vsyncpa [#allocation6], 0
    %18 = vsyncpa [#allocation9], 0
    %19 = vsyncpa [#allocation12], 0
    %20 = vsyncpa [#allocation4], 0
    %s21 = scalar_lea.sflag [#allocation4], 1
    %22 = vsyncpa %s21, 0
    loop: start=0, step=1, limit=4
    $region2: #{tpu_custom_call.1} parent=1 // loop_pre_header
      _
    $region3: #{tpu_custom_call.1} parent=1 // loop_header
      %s24 = sphi 0, %s28
      %p25 = scmp.ge.s32.totalorder %s24, 4
      %s34 = sphi 0, %s36
      %s37 = sphi 0, %s34
      %s38 = sphi 0, %s37
      %s54 = sphi 0, %s38
      %s58 = sphi 0, %s58
      %s60 = sphi 0, %s58
      %s61 = sphi 0, %s60
      %s75 = sphi 0, %s61
      %s79 = sphi 0, %s79
      %s81 = sphi 0, %s79
      %s82 = sphi 0, %s81
      %s96 = sphi 0, %s82
      %s100 = sphi 0, %s100
      %s102 = sphi 0, %s100
      %s103 = sphi 0, %s102
      %s117 = sphi 0, %s103
      %s121 = sphi 0, %s121
      %s123 = sphi 0, %s121
      %s124 = sphi 0, %s123
      %s138 = sphi 0, %s124
      %s142 = sphi 0, %s142
      %s144 = sphi 0, %s142
      %s145 = sphi 0, %s144
      %s159 = sphi 0, %s145
      %s163 = sphi 0, %s163
      %s165 = sphi 0, %s163
      %s166 = sphi 0, %s165
      %s180 = sphi 0, %s166
      %s184 = sphi 0, %s184
      %s186 = sphi 0, %s184
      %s187 = sphi 0, %s186
      %s201 = sphi 0, %s187
      %s205 = sphi 0, %s205
      %s207 = sphi 0, %s205
      %s208 = sphi 0, %s207
      %s222 = sphi 0, %s208
      %s226 = sphi 0, %s226
      %s228 = sphi 0, %s226
      %s229 = sphi 0, %s228
      %s243 = sphi 0, %s229
      %s247 = sphi 0, %s247
      %s249 = sphi 0, %s247
      %s250 = sphi 0, %s249
      %s264 = sphi 0, %s250
      %s270 = sphi 0, %s272
      %s273 = sphi 0, %s270
      %s274 = sphi 0, %s273
      %s290 = sphi 0, %s274
    $region4: #{tpu_custom_call.1} parent=1 // loop_header_branch
      %27 = sbr.rel (%p25) target = $region8
    $region5: #{tpu_custom_call.1} parent=1 // loop_body
      %s29 = ssub.s32 %s24, 1
      %s30 = ssub.s32 %s24, 2
      %s31 = sadd.s32 %s24, 1
      %s32 = ssub.s32 %s24, %s31
      %p33 = scmp.eq.s32.totalorder %s32, 0
      %s35 = sadd.s32 %s34, 1
      %s36 = scalar_select %p33, %s34, %s35
      %p39 = pneg %p33
      %p40 = scmp.eq.s32.totalorder %s24, 1
      %p41 = por %p39, %p40
      %p42 = scmp.ne.s32.totalorder %s34, %s37
      %p43 = scmp.eq.s32.totalorder %s24, 0
      %p44 = por %p42, %p43
      %p45 = scmp.ne.s32.totalorder %s34, %s37
      %p46 = scmp.eq.s32.totalorder %s29, 1
      %p47 = por %p45, %p46
      %p48 = scmp.ne.s32.totalorder %s37, %s38
      %p49 = scmp.eq.s32.totalorder %s29, 0
      %p50 = por %p48, %p49
      %p51 = scmp.ne.s32.totalorder %s37, %s38
      %p52 = scmp.eq.s32.totalorder %s30, 1
      %p53 = por %p51, %p52
      %p55 = scmp.ne.s32.totalorder %s38, %s54
      %p56 = scmp.eq.s32.totalorder %s30, 0
      %p57 = por %p55, %p56
      %s59 = sadd.s32 %s58, 1
      %p62 = scmp.eq.s32.totalorder %s24, 1
      %p63 = scmp.ne.s32.totalorder %s58, %s60
      %p64 = scmp.eq.s32.totalorder %s24, 0
      %p65 = por %p63, %p64
      %p66 = scmp.ne.s32.totalorder %s58, %s60
      %p67 = scmp.eq.s32.totalorder %s29, 1
      %p68 = por %p66, %p67
      %p69 = scmp.ne.s32.totalorder %s60, %s61
      %p70 = scmp.eq.s32.totalorder %s29, 0
      %p71 = por %p69, %p70
      %p72 = scmp.ne.s32.totalorder %s60, %s61
      %p73 = scmp.eq.s32.totalorder %s30, 1
      %p74 = por %p72, %p73
      %p76 = scmp.ne.s32.totalorder %s61, %s75
      %p77 = scmp.eq.s32.totalorder %s30, 0
      %p78 = por %p76, %p77
      %s80 = sadd.s32 %s79, 1
      %p83 = scmp.eq.s32.totalorder %s24, 1
      %p84 = scmp.ne.s32.totalorder %s79, %s81
      %p85 = scmp.eq.s32.totalorder %s24, 0
      %p86 = por %p84, %p85
      %p87 = scmp.ne.s32.totalorder %s79, %s81
      %p88 = scmp.eq.s32.totalorder %s29, 1
      %p89 = por %p87, %p88
      %p90 = scmp.ne.s32.totalorder %s81, %s82
      %p91 = scmp.eq.s32.totalorder %s29, 0
      %p92 = por %p90, %p91
      %p93 = scmp.ne.s32.totalorder %s81, %s82
      %p94 = scmp.eq.s32.totalorder %s30, 1
      %p95 = por %p93, %p94
      %p97 = scmp.ne.s32.totalorder %s82, %s96
      %p98 = scmp.eq.s32.totalorder %s30, 0
      %p99 = por %p97, %p98
      %s101 = sadd.s32 %s100, 1
      %p104 = scmp.eq.s32.totalorder %s24, 1
      %p105 = scmp.ne.s32.totalorder %s100, %s102
      %p106 = scmp.eq.s32.totalorder %s24, 0
      %p107 = por %p105, %p106
      %p108 = scmp.ne.s32.totalorder %s100, %s102
      %p109 = scmp.eq.s32.totalorder %s29, 1
      %p110 = por %p108, %p109
      %p111 = scmp.ne.s32.totalorder %s102, %s103
      %p112 = scmp.eq.s32.totalorder %s29, 0
      %p113 = por %p111, %p112
      %p114 = scmp.ne.s32.totalorder %s102, %s103
      %p115 = scmp.eq.s32.totalorder %s30, 1
      %p116 = por %p114, %p115
      %p118 = scmp.ne.s32.totalorder %s103, %s117
      %p119 = scmp.eq.s32.totalorder %s30, 0
      %p120 = por %p118, %p119
      %s122 = sadd.s32 %s121, 1
      %p125 = scmp.eq.s32.totalorder %s24, 1
      %p126 = scmp.ne.s32.totalorder %s121, %s123
      %p127 = scmp.eq.s32.totalorder %s24, 0
      %p128 = por %p126, %p127
      %p129 = scmp.ne.s32.totalorder %s121, %s123
      %p130 = scmp.eq.s32.totalorder %s29, 1
      %p131 = por %p129, %p130
      %p132 = scmp.ne.s32.totalorder %s123, %s124
      %p133 = scmp.eq.s32.totalorder %s29, 0
      %p134 = por %p132, %p133
      %p135 = scmp.ne.s32.totalorder %s123, %s124
      %p136 = scmp.eq.s32.totalorder %s30, 1
      %p137 = por %p135, %p136
      %p139 = scmp.ne.s32.totalorder %s124, %s138
      %p140 = scmp.eq.s32.totalorder %s30, 0
      %p141 = por %p139, %p140
      %s143 = sadd.s32 %s142, 1
      %p146 = scmp.eq.s32.totalorder %s24, 1
      %p147 = scmp.ne.s32.totalorder %s142, %s144
      %p148 = scmp.eq.s32.totalorder %s24, 0
      %p149 = por %p147, %p148
      %p150 = scmp.ne.s32.totalorder %s142, %s144
      %p151 = scmp.eq.s32.totalorder %s29, 1
      %p152 = por %p150, %p151
      %p153 = scmp.ne.s32.totalorder %s144, %s145
      %p154 = scmp.eq.s32.totalorder %s29, 0
      %p155 = por %p153, %p154
      %p156 = scmp.ne.s32.totalorder %s144, %s145
      %p157 = scmp.eq.s32.totalorder %s30, 1
      %p158 = por %p156, %p157
      %p160 = scmp.ne.s32.totalorder %s145, %s159
      %p161 = scmp.eq.s32.totalorder %s30, 0
      %p162 = por %p160, %p161
      %s164 = sadd.s32 %s163, 1
      %p167 = scmp.eq.s32.totalorder %s24, 1
      %p168 = scmp.ne.s32.totalorder %s163, %s165
      %p169 = scmp.eq.s32.totalorder %s24, 0
      %p170 = por %p168, %p169
      %p171 = scmp.ne.s32.totalorder %s163, %s165
      %p172 = scmp.eq.s32.totalorder %s29, 1
      %p173 = por %p171, %p172
      %p174 = scmp.ne.s32.totalorder %s165, %s166
      %p175 = scmp.eq.s32.totalorder %s29, 0
      %p176 = por %p174, %p175
      %p177 = scmp.ne.s32.totalorder %s165, %s166
      %p178 = scmp.eq.s32.totalorder %s30, 1
      %p179 = por %p177, %p178
      %p181 = scmp.ne.s32.totalorder %s166, %s180
      %p182 = scmp.eq.s32.totalorder %s30, 0
      %p183 = por %p181, %p182
      %s185 = sadd.s32 %s184, 1
      %p188 = scmp.eq.s32.totalorder %s24, 1
      %p189 = scmp.ne.s32.totalorder %s184, %s186
      %p190 = scmp.eq.s32.totalorder %s24, 0
      %p191 = por %p189, %p190
      %p192 = scmp.ne.s32.totalorder %s184, %s186
      %p193 = scmp.eq.s32.totalorder %s29, 1
      %p194 = por %p192, %p193
      %p195 = scmp.ne.s32.totalorder %s186, %s187
      %p196 = scmp.eq.s32.totalorder %s29, 0
      %p197 = por %p195, %p196
      %p198 = scmp.ne.s32.totalorder %s186, %s187
      %p199 = scmp.eq.s32.totalorder %s30, 1
      %p200 = por %p198, %p199
      %p202 = scmp.ne.s32.totalorder %s187, %s201
      %p203 = scmp.eq.s32.totalorder %s30, 0
      %p204 = por %p202, %p203
      %s206 = sadd.s32 %s205, 1
      %p209 = scmp.eq.s32.totalorder %s24, 1
      %p210 = scmp.ne.s32.totalorder %s205, %s207
      %p211 = scmp.eq.s32.totalorder %s24, 0
      %p212 = por %p210, %p211
      %p213 = scmp.ne.s32.totalorder %s205, %s207
      %p214 = scmp.eq.s32.totalorder %s29, 1
      %p215 = por %p213, %p214
      %p216 = scmp.ne.s32.totalorder %s207, %s208
      %p217 = scmp.eq.s32.totalorder %s29, 0
      %p218 = por %p216, %p217
      %p219 = scmp.ne.s32.totalorder %s207, %s208
      %p220 = scmp.eq.s32.totalorder %s30, 1
      %p221 = por %p219, %p220
      %p223 = scmp.ne.s32.totalorder %s208, %s222
      %p224 = scmp.eq.s32.totalorder %s30, 0
      %p225 = por %p223, %p224
      %s227 = sadd.s32 %s226, 1
      %p230 = scmp.eq.s32.totalorder %s24, 1
      %p231 = scmp.ne.s32.totalorder %s226, %s228
      %p232 = scmp.eq.s32.totalorder %s24, 0
      %p233 = por %p231, %p232
      %p234 = scmp.ne.s32.totalorder %s226, %s228
      %p235 = scmp.eq.s32.totalorder %s29, 1
      %p236 = por %p234, %p235
      %p237 = scmp.ne.s32.totalorder %s228, %s229
      %p238 = scmp.eq.s32.totalorder %s29, 0
      %p239 = por %p237, %p238
      %p240 = scmp.ne.s32.totalorder %s228, %s229
      %p241 = scmp.eq.s32.totalorder %s30, 1
      %p242 = por %p240, %p241
      %p244 = scmp.ne.s32.totalorder %s229, %s243
      %p245 = scmp.eq.s32.totalorder %s30, 0
      %p246 = por %p244, %p245
      %s248 = sadd.s32 %s247, 1
      %p251 = scmp.eq.s32.totalorder %s24, 1
      %p252 = scmp.ne.s32.totalorder %s247, %s249
      %p253 = scmp.eq.s32.totalorder %s24, 0
      %p254 = por %p252, %p253
      %p255 = scmp.ne.s32.totalorder %s247, %s249
      %p256 = scmp.eq.s32.totalorder %s29, 1
      %p257 = por %p255, %p256
      %p258 = scmp.ne.s32.totalorder %s249, %s250
      %p259 = scmp.eq.s32.totalorder %s29, 0
      %p260 = por %p258, %p259
      %p261 = scmp.ne.s32.totalorder %s249, %s250
      %p262 = scmp.eq.s32.totalorder %s30, 1
      %p263 = por %p261, %p262
      %p265 = scmp.ne.s32.totalorder %s250, %s264
      %p266 = scmp.eq.s32.totalorder %s30, 0
      %p267 = por %p265, %p266
      %s268 = ssub.s32 %s24, %s31
      %p269 = scmp.eq.s32.totalorder %s268, 0
      %s271 = sadd.s32 %s270, 1
      %s272 = scalar_select %p269, %s270, %s271
      %p275 = pneg %p269
      %p276 = scmp.eq.s32.totalorder %s24, 1
      %p277 = por %p275, %p276
      %p278 = scmp.ne.s32.totalorder %s270, %s273
      %p279 = scmp.eq.s32.totalorder %s24, 0
      %p280 = por %p278, %p279
      %p281 = scmp.ne.s32.totalorder %s270, %s273
      %p282 = scmp.eq.s32.totalorder %s29, 1
      %p283 = por %p281, %p282
      %p284 = scmp.ne.s32.totalorder %s273, %s274
      %p285 = scmp.eq.s32.totalorder %s29, 0
      %p286 = por %p284, %p285
      %p287 = scmp.ne.s32.totalorder %s273, %s274
      %p288 = scmp.eq.s32.totalorder %s30, 1
      %p289 = por %p287, %p288
      %p291 = scmp.ne.s32.totalorder %s274, %s290
      %p292 = scmp.eq.s32.totalorder %s30, 0
      %p293 = por %p291, %p292
      %p294 = scmp.le.s32.totalorder 1, %s24
      %p295 = scmp.lt.s32.totalorder %s24, 3
      %p296 = pnand %p294, %p295
      %p297 = pneg %p296
      // Predicated region
      $region9: #{tpu_custom_call.1} parent=5 // pred_check
        _
      $region10: #{tpu_custom_call.1} parent=5 // pred_check_branch
        %299 = sbr.rel (%p296) target = $region12
      $region11: #{tpu_custom_call.1} parent=5 // pred_region
        %s300 = ssub.s32 %s24, 1
        // Predicated region
        $region13: #{tpu_custom_call.1} parent=11 // pred_check
          %p301 = pneg %p71
        $region14: #{tpu_custom_call.1} parent=11 // pred_check_branch
          %303 = sbr.rel (%p301) target = $region16
        $region15: #{tpu_custom_call.1} parent=11 // pred_region
          %s305 = ssub.s32 512, 512
          %306 = vsyncadd [#allocation3], %s305
          %s307 = sshll.u32 [#allocation2], 4
          %s308 = int_to_ptr.vmem [resolvable:$true] %s307
          %313 = dma.hbm_to_vmem [thread:$0]  %s1, 512, %s308, [#allocation3], 128, 128, 8
        $region16: #{tpu_custom_call.1} parent=11 // pred_fallthru
          _
        // Predicated region
        $region17: #{tpu_custom_call.1} parent=11 // pred_check
          %p314 = pneg %p92
        $region18: #{tpu_custom_call.1} parent=11 // pred_check_branch
          %316 = sbr.rel (%p314) target = $region20
        $region19: #{tpu_custom_call.1} parent=11 // pred_region
          %s318 = ssub.s32 16, 16
          %319 = vsyncadd [#allocation6], %s318
          %s321 = sshll.u32 [#allocation5], 4
          %s322 = int_to_ptr.vmem [resolvable:$true] %s321
          %324 = dma.hbm_to_vmem [thread:$0]  %s2, 16, %s322, [#allocation6]
        $region20: #{tpu_custom_call.1} parent=11 // pred_fallthru
          _
        // Predicated region
        $region21: #{tpu_custom_call.1} parent=11 // pred_check
          %p325 = pneg %p113
        $region22: #{tpu_custom_call.1} parent=11 // pred_check_branch
          %327 = sbr.rel (%p325) target = $region24
        $region23: #{tpu_custom_call.1} parent=11 // pred_region
          %s329 = ssub.s32 512, 512
          %330 = vsyncadd [#allocation6], %s329
          %s331 = sshll.u32 [#allocation7], 4
          %s332 = int_to_ptr.vmem [resolvable:$true] %s331
          %337 = dma.hbm_to_vmem [thread:$0]  %s3, 512, %s332, [#allocation6], 128, 128, 8
        $region24: #{tpu_custom_call.1} parent=11 // pred_fallthru
          _
        // Predicated region
        $region25: #{tpu_custom_call.1} parent=11 // pred_check
          %p338 = pneg %p134
        $region26: #{tpu_custom_call.1} parent=11 // pred_check_branch
          %340 = sbr.rel (%p338) target = $region28
        $region27: #{tpu_custom_call.1} parent=11 // pred_region
          %s342 = ssub.s32 16, 16
          %343 = vsyncadd [#allocation9], %s342
          %s345 = sshll.u32 [#allocation8], 4
          %s346 = int_to_ptr.vmem [resolvable:$true] %s345
          %348 = dma.hbm_to_vmem [thread:$0]  %s4, 16, %s346, [#allocation9]
        $region28: #{tpu_custom_call.1} parent=11 // pred_fallthru
          _
        // Predicated region
        $region29: #{tpu_custom_call.1} parent=11 // pred_check
          %p349 = pneg %p155
        $region30: #{tpu_custom_call.1} parent=11 // pred_check_branch
          %351 = sbr.rel (%p349) target = $region32
        $region31: #{tpu_custom_call.1} parent=11 // pred_region
          %s353 = ssub.s32 512, 512
          %354 = vsyncadd [#allocation9], %s353
          %s355 = sshll.u32 [#allocation10], 4
          %s356 = int_to_ptr.vmem [resolvable:$true] %s355
          %361 = dma.hbm_to_vmem [thread:$0]  %s5, 512, %s356, [#allocation9], 128, 128, 8
        $region32: #{tpu_custom_call.1} parent=11 // pred_fallthru
          _
        // Predicated region
        $region33: #{tpu_custom_call.1} parent=11 // pred_check
          %p362 = pneg %p176
        $region34: #{tpu_custom_call.1} parent=11 // pred_check_branch
          %364 = sbr.rel (%p362) target = $region36
        $region35: #{tpu_custom_call.1} parent=11 // pred_region
          %s366 = ssub.s32 16, 16
          %367 = vsyncadd [#allocation12], %s366
          %s369 = sshll.u32 [#allocation11], 4
          %s370 = int_to_ptr.vmem [resolvable:$true] %s369
          %372 = dma.hbm_to_vmem [thread:$0]  %s6, 16, %s370, [#allocation12]
        $region36: #{tpu_custom_call.1} parent=11 // pred_fallthru
          _
        // Predicated region
        $region37: #{tpu_custom_call.1} parent=11 // pred_check
          %p373 = pneg %p197
        $region38: #{tpu_custom_call.1} parent=11 // pred_check_branch
          %375 = sbr.rel (%p373) target = $region40
        $region39: #{tpu_custom_call.1} parent=11 // pred_region
          _
        $region40: #{tpu_custom_call.1} parent=11 // pred_fallthru
          _
        // Predicated region
        $region41: #{tpu_custom_call.1} parent=11 // pred_check
          %p376 = pneg %p218
        $region42: #{tpu_custom_call.1} parent=11 // pred_check_branch
          %378 = sbr.rel (%p376) target = $region44
        $region43: #{tpu_custom_call.1} parent=11 // pred_region
          %s380 = ssub.s32 16, 16
          %381 = vsyncadd [#allocation12], %s380
          %s383 = sshll.u32 [#allocation13], 4
          %s384 = int_to_ptr.vmem [resolvable:$true] %s383
          %386 = dma.hbm_to_vmem [thread:$0]  %s8, 16, %s384, [#allocation12]
        $region44: #{tpu_custom_call.1} parent=11 // pred_fallthru
          _
        // Predicated region
        $region45: #{tpu_custom_call.1} parent=11 // pred_check
          %p387 = pneg %p239
        $region46: #{tpu_custom_call.1} parent=11 // pred_check_branch
          %389 = sbr.rel (%p387) target = $region48
        $region47: #{tpu_custom_call.1} parent=11 // pred_region
          _
        $region48: #{tpu_custom_call.1} parent=11 // pred_fallthru
          _
        // Predicated region
        $region49: #{tpu_custom_call.1} parent=11 // pred_check
          %p390 = pneg %p260
        $region50: #{tpu_custom_call.1} parent=11 // pred_check_branch
          %392 = sbr.rel (%p390) target = $region52
        $region51: #{tpu_custom_call.1} parent=11 // pred_region
          _
        $region52: #{tpu_custom_call.1} parent=11 // pred_fallthru
          _
      $region12: #{tpu_custom_call.1} parent=5 // pred_fallthru
        _
      %p393 = scmp.lt.s32.totalorder %s24, 2
      // Predicated region
      $region53: #{tpu_custom_call.1} parent=5 // pred_check
        %p394 = pneg %p393
      $region54: #{tpu_custom_call.1} parent=5 // pred_check_branch
        %396 = sbr.rel (%p394) target = $region56
      $region55: #{tpu_custom_call.1} parent=5 // pred_region
        // Predicated region
        $region57: #{tpu_custom_call.1} parent=55 // pred_check
          %p397 = pneg %p44
        $region58: #{tpu_custom_call.1} parent=55 // pred_check_branch
          %399 = sbr.rel (%p397) target = $region60
        $region59: #{tpu_custom_call.1} parent=55 // pred_region
          %p400 = scmp.lt.s32.totalorder %s24, 1
          %s401 = scalar_select %p400, %s24, 1
          %s402 = smul.addr %s401, 8
          %s403 = scalar_lea.vmem %s0, %s402
        $region60: #{tpu_custom_call.1} parent=55 // pred_fallthru
          _
      $region56: #{tpu_custom_call.1} parent=5 // pred_fallthru
        _
      %p404 = scmp.le.s32.totalorder 1, %s24
      %p405 = scmp.lt.s32.totalorder %s24, 3
      %p406 = pnand %p404, %p405
      %p407 = pneg %p406
      // Predicated region
      $region61: #{tpu_custom_call.1} parent=5 // pred_check
        _
      $region62: #{tpu_custom_call.1} parent=5 // pred_check_branch
        %409 = sbr.rel (%p406) target = $region64
      $region63: #{tpu_custom_call.1} parent=5 // pred_region
        %s410 = ssub.s32 %s24, 1
        // Predicated region
        $region65: #{tpu_custom_call.1} parent=63 // pred_check
          %p411 = pneg %p71
        $region66: #{tpu_custom_call.1} parent=63 // pred_check_branch
          %413 = sbr.rel (%p411) target = $region68
        $region67: #{tpu_custom_call.1} parent=63 // pred_region
          %414 = dma.done [#allocation3], 512
        $region68: #{tpu_custom_call.1} parent=63 // pred_fallthru
          _
        // Predicated region
        $region69: #{tpu_custom_call.1} parent=63 // pred_check
          %p415 = pneg %p92
        $region70: #{tpu_custom_call.1} parent=63 // pred_check_branch
          %417 = sbr.rel (%p415) target = $region72
        $region71: #{tpu_custom_call.1} parent=63 // pred_region
          %418 = dma.done [#allocation6], 16
        $region72: #{tpu_custom_call.1} parent=63 // pred_fallthru
          _
        // Predicated region
        $region73: #{tpu_custom_call.1} parent=63 // pred_check
          %p419 = pneg %p113
        $region74: #{tpu_custom_call.1} parent=63 // pred_check_branch
          %421 = sbr.rel (%p419) target = $region76
        $region75: #{tpu_custom_call.1} parent=63 // pred_region
          %422 = dma.done [#allocation6], 512
        $region76: #{tpu_custom_call.1} parent=63 // pred_fallthru
          _
        // Predicated region
        $region77: #{tpu_custom_call.1} parent=63 // pred_check
          %p423 = pneg %p134
        $region78: #{tpu_custom_call.1} parent=63 // pred_check_branch
          %425 = sbr.rel (%p423) target = $region80
        $region79: #{tpu_custom_call.1} parent=63 // pred_region
          %426 = dma.done [#allocation9], 16
        $region80: #{tpu_custom_call.1} parent=63 // pred_fallthru
          _
        // Predicated region
        $region81: #{tpu_custom_call.1} parent=63 // pred_check
          %p427 = pneg %p155
        $region82: #{tpu_custom_call.1} parent=63 // pred_check_branch
          %429 = sbr.rel (%p427) target = $region84
        $region83: #{tpu_custom_call.1} parent=63 // pred_region
          %430 = dma.done [#allocation9], 512
        $region84: #{tpu_custom_call.1} parent=63 // pred_fallthru
          _
        // Predicated region
        $region85: #{tpu_custom_call.1} parent=63 // pred_check
          %p431 = pneg %p176
        $region86: #{tpu_custom_call.1} parent=63 // pred_check_branch
          %433 = sbr.rel (%p431) target = $region88
        $region87: #{tpu_custom_call.1} parent=63 // pred_region
          %434 = dma.done [#allocation12], 16
        $region88: #{tpu_custom_call.1} parent=63 // pred_fallthru
          _
        // Predicated region
        $region89: #{tpu_custom_call.1} parent=63 // pred_check
          %p435 = pneg %p218
        $region90: #{tpu_custom_call.1} parent=63 // pred_check_branch
          %437 = sbr.rel (%p435) target = $region92
        $region91: #{tpu_custom_call.1} parent=63 // pred_region
          %438 = dma.done [#allocation12], 16
        $region92: #{tpu_custom_call.1} parent=63 // pred_fallthru
          _
        %p439 = scmp.lt.s32.totalorder %s29, 1
        %s440 = scalar_select %p439, %s29, 1
        %s441 = smul.addr %s440, 8
        %s442 = scalar_lea.vmem %s0, %s441
        %p443 = pneg %p50
        %p444 = pneg %p47
        %p445 = pneg %p71
        %p446 = pneg %p68
        %p447 = pneg %p92
        %p448 = pneg %p89
        %p449 = pneg %p113
        %p450 = pneg %p110
        %p451 = pneg %p134
        %p452 = pneg %p131
        %p453 = pneg %p155
        %p454 = pneg %p152
        %p455 = pneg %p176
        %p456 = pneg %p173
        %p457 = pneg %p197
        %p458 = pneg %p194
        %p459 = pneg %p218
        %p460 = pneg %p215
        %p461 = pneg %p239
        %p462 = pneg %p236
        %p463 = pneg %p260
        %p464 = pneg %p257
        %p465 = pneg %p286
        %p466 = pneg %p283
        %s467 = sand.u32 %s273, 1
        %s468 = scalar_lea.sflag [#allocation4], %s467
        %s469 = sand.u32 %s273, 1
        %s470 = smul.addr %s469, 8
        %s471 = scalar_lea.vmem [#allocation14], %s470
        %p472 = scmp.lt.s32.totalorder %s29, 1
        %s473 = scalar_select %p472, %s29, 1
        %s474 = smul.addr %s473, 8
        %s475 = scalar_lea.vmem %s0, %s474
        %v476 = vld [vmem:[%s475] sm:$0xff]
        %v477 = vld [vmem:[#allocation2] sm:$0xff]
        %v478 = vld [vmem:[#allocation2 + $0x8] sm:$0xff]
        %v479 = vld [vmem:[#allocation2 + $0x10] sm:$0xff]
        %v480 = vld [vmem:[#allocation2 + $0x18] sm:$0xff]
        %v481 = vld [vmem:[#allocation5] sm:$0x1]
        %v482 = vld [vmem:[#allocation7] sm:$0xff]
        %v483 = vld [vmem:[#allocation7 + $0x8] sm:$0xff]
        %v484 = vld [vmem:[#allocation7 + $0x10] sm:$0xff]
        %v485 = vld [vmem:[#allocation7 + $0x18] sm:$0xff]
        %v486 = vld [vmem:[#allocation8] sm:$0x1]
        %v488 = vlaneseq
        %v489 = vshrl.u32 %v488, 7
        %v490 = vsub.s32 0, %v489
        %v491 = vrot.slane %v481, %v490
        %vm493 = vcmask 261120
        %v495 = vsel %vm493, %v476, 0
        %497 = vmatprep.subr.mxu0 0.0
        %498 = vmatpush1.msra.mxu0 0.0
        %499 = vmatprep.subr.mxu0 0.0
        %500 = vmatpush1.msra.mxu0 0.0
        %501 = vmatprep.subr.mxu0 0.0
        %502 = vmatpush1.msra.mxu0 0.0
        %503 = vmatprep.subr.mxu0 0.0
        %504 = vmatpush1.msra.mxu0 0.0
        %505 = vmatprep.subr.mxu0 0.0
        %506 = vmatpush1.msra.mxu0 0.0
        %507 = vmatprep.subr.mxu0 0.0
        %508 = vmatpush1.msra.mxu0 0.0
        %509 = vmatprep.subr.mxu0 0.0
        %510 = vmatpush1.msra.mxu0 0.0
        %511 = vmatprep.subr.mxu0 0.0
        %512 = vmatpush1.msra.mxu0 0.0
        %513 = vmatprep.subr.mxu0 0.0
        %514 = vmatpush1.msra.mxu0 0.0
        %515 = vmatprep.subr.mxu0 0.0
        %516 = vmatpush1.msra.mxu0 0.0
        %517 = vmatprep.subr.mxu0 0.0
        %518 = vmatpush1.msra.mxu0 0.0
        %519 = vmatprep.subr.mxu0 0.0
        %520 = vmatpush1.msra.mxu0 0.0
        %521 = vmatprep.subr.mxu0 0.0
        %522 = vmatpush1.msra.mxu0 %v480
        %523 = vmatprep.subr.mxu0 0.0
        %524 = vmatpush1.msra.mxu0 %v479
        %525 = vmatprep.subr.mxu0 0.0
        %526 = vmatpush1.msra.mxu0 %v478
        %527 = vmatprep.subr.mxu0 0.0
        %528 = vmatpush1.msra.mxu0 %v477
        %529 = vmatprep.subr.mxu0 0.0
        %530 = vmatpush2.msra.mxu0 0.0
        %531 = vmatprep.subr.mxu0 0.0
        %532 = vmatpush2.msra.mxu0 0.0
        %533 = vmatprep.subr.mxu0 0.0
        %534 = vmatpush2.msra.mxu0 0.0
        %535 = vmatprep.subr.mxu0 0.0
        %536 = vmatpush2.msra.mxu0 0.0
        %537 = vmatprep.subr.mxu0 0.0
        %538 = vmatpush2.msra.mxu0 0.0
        %539 = vmatprep.subr.mxu0 0.0
        %540 = vmatpush2.msra.mxu0 0.0
        %541 = vmatprep.subr.mxu0 0.0
        %542 = vmatpush2.msra.mxu0 0.0
        %543 = vmatprep.subr.mxu0 0.0
        %544 = vmatpush2.msra.mxu0 0.0
        %545 = vmatprep.subr.mxu0 0.0
        %546 = vmatpush2.msra.mxu0 0.0
        %547 = vmatprep.subr.mxu0 0.0
        %548 = vmatpush2.msra.mxu0 0.0
        %549 = vmatprep.subr.mxu0 0.0
        %550 = vmatpush2.msra.mxu0 0.0
        %551 = vmatprep.subr.mxu0 0.0
        %552 = vmatpush2.msra.mxu0 0.0
        %553 = vmatprep.subr.mxu0 0.0
        %554 = vmatpush2.msra.mxu0 0.0
        %555 = vmatprep.subr.mxu0 0.0
        %556 = vmatpush2.msra.mxu0 0.0
        %557 = vmatprep.subr.mxu0 0.0
        %558 = vmatpush2.msra.mxu0 0.0
        %559 = vmatprep.subr.mxu0 0.0
        %560 = vmatpush2.msra.mxu0 0.0
        %561 = vmatprep.mubr.f32.mxu0 0.0
        %562 = vmatmul.mubr.f32.gmra.mxu0 %v495
        %v563 = vpop.f32.mrf.mxu0
        %v564 = vadd.f32 %v491, %v563
        %v565 = vpop.f32.mrf.mxu0
        %566 = vdwg.mxu0
        %v567 = vmax.f32 %v564, 0.0
        %v569 = vlaneseq
        %v570 = vshrl.u32 %v569, 7
        %v571 = vsub.s32 0, %v570
        %v572 = vrot.slane %v486, %v571
        %v575 = vsel %vm493, %v567, 0
        %577 = vmatprep.subr.mxu0 0.0
        %578 = vmatpush1.msra.mxu0 0.0
        %579 = vmatprep.subr.mxu0 0.0
        %580 = vmatpush1.msra.mxu0 0.0
        %581 = vmatprep.subr.mxu0 0.0
        %582 = vmatpush1.msra.mxu0 0.0
        %583 = vmatprep.subr.mxu0 0.0
        %584 = vmatpush1.msra.mxu0 0.0
        %585 = vmatprep.subr.mxu0 0.0
        %586 = vmatpush1.msra.mxu0 0.0
        %587 = vmatprep.subr.mxu0 0.0
        %588 = vmatpush1.msra.mxu0 0.0
        %589 = vmatprep.subr.mxu0 0.0
        %590 = vmatpush1.msra.mxu0 0.0
        %591 = vmatprep.subr.mxu0 0.0
        %592 = vmatpush1.msra.mxu0 0.0
        %593 = vmatprep.subr.mxu0 0.0
        %594 = vmatpush1.msra.mxu0 0.0
        %595 = vmatprep.subr.mxu0 0.0
        %596 = vmatpush1.msra.mxu0 0.0
        %597 = vmatprep.subr.mxu0 0.0
        %598 = vmatpush1.msra.mxu0 0.0
        %599 = vmatprep.subr.mxu0 0.0
        %600 = vmatpush1.msra.mxu0 0.0
        %601 = vmatprep.subr.mxu0 0.0
        %602 = vmatpush1.msra.mxu0 %v485
        %603 = vmatprep.subr.mxu0 0.0
        %604 = vmatpush1.msra.mxu0 %v484
        %605 = vmatprep.subr.mxu0 0.0
        %606 = vmatpush1.msra.mxu0 %v483
        %607 = vmatprep.subr.mxu0 0.0
        %608 = vmatpush1.msra.mxu0 %v482
        %609 = vmatprep.subr.mxu0 0.0
        %610 = vmatpush2.msra.mxu0 0.0
        %611 = vmatprep.subr.mxu0 0.0
        %612 = vmatpush2.msra.mxu0 0.0
        %613 = vmatprep.subr.mxu0 0.0
        %614 = vmatpush2.msra.mxu0 0.0
        %615 = vmatprep.subr.mxu0 0.0
        %616 = vmatpush2.msra.mxu0 0.0
        %617 = vmatprep.subr.mxu0 0.0
        %618 = vmatpush2.msra.mxu0 0.0
        %619 = vmatprep.subr.mxu0 0.0
        %620 = vmatpush2.msra.mxu0 0.0
        %621 = vmatprep.subr.mxu0 0.0
        %622 = vmatpush2.msra.mxu0 0.0
        %623 = vmatprep.subr.mxu0 0.0
        %624 = vmatpush2.msra.mxu0 0.0
        %625 = vmatprep.subr.mxu0 0.0
        %626 = vmatpush2.msra.mxu0 0.0
        %627 = vmatprep.subr.mxu0 0.0
        %628 = vmatpush2.msra.mxu0 0.0
        %629 = vmatprep.subr.mxu0 0.0
        %630 = vmatpush2.msra.mxu0 0.0
        %631 = vmatprep.subr.mxu0 0.0
        %632 = vmatpush2.msra.mxu0 0.0
        %633 = vmatprep.subr.mxu0 0.0
        %634 = vmatpush2.msra.mxu0 0.0
        %635 = vmatprep.subr.mxu0 0.0
        %636 = vmatpush2.msra.mxu0 0.0
        %637 = vmatprep.subr.mxu0 0.0
        %638 = vmatpush2.msra.mxu0 0.0
        %639 = vmatprep.subr.mxu0 0.0
        %640 = vmatpush2.msra.mxu0 0.0
        %641 = vmatprep.mubr.f32.mxu0 0.0
        %642 = vmatmul.mubr.f32.gmra.mxu0 %v575
        %v643 = vpop.f32.mrf.mxu0
        %v644 = vadd.f32 %v572, %v643
        %v645 = vpop.f32.mrf.mxu0
        %646 = vdwg.mxu0
        %v647 = vadd.f32 %v644, %v564
        %v648 = vadd.f32 %v647, %v476
        %v649 = vld [vmem:[#allocation10] sm:$0xff]
        %v650 = vld [vmem:[#allocation10 + $0x8] sm:$0xff]
        %v651 = vld [vmem:[#allocation10 + $0x10] sm:$0xff]
        %v652 = vld [vmem:[#allocation10 + $0x18] sm:$0xff]
        %v653 = vld [vmem:[#allocation11] sm:$0x1]
        %v654 = vld [vmem:[%s7] sm:$0xff]
        %v655 = vld [vmem:[%s7 + $0x8] sm:$0xff]
        %v656 = vld [vmem:[%s7 + $0x10] sm:$0xff]
        %v657 = vld [vmem:[%s7 + $0x18] sm:$0xff]
        %v658 = vld [vmem:[%s7 + $0x20] sm:$0xff]
        %v659 = vld [vmem:[%s7 + $0x28] sm:$0xff]
        %v660 = vld [vmem:[#allocation13] sm:$0x1]
        %v662 = vlaneseq
        %v663 = vshrl.u32 %v662, 7
        %v664 = vsub.s32 0, %v663
        %v665 = vrot.slane %v653, %v664
        %v668 = vsel %vm493, %v648, 0
        %670 = vmatprep.subr.mxu0 0.0
        %671 = vmatpush1.msra.mxu0 0.0
        %672 = vmatprep.subr.mxu0 0.0
        %673 = vmatpush1.msra.mxu0 0.0
        %674 = vmatprep.subr.mxu0 0.0
        %675 = vmatpush1.msra.mxu0 0.0
        %676 = vmatprep.subr.mxu0 0.0
        %677 = vmatpush1.msra.mxu0 0.0
        %678 = vmatprep.subr.mxu0 0.0
        %679 = vmatpush1.msra.mxu0 0.0
        %680 = vmatprep.subr.mxu0 0.0
        %681 = vmatpush1.msra.mxu0 0.0
        %682 = vmatprep.subr.mxu0 0.0
        %683 = vmatpush1.msra.mxu0 0.0
        %684 = vmatprep.subr.mxu0 0.0
        %685 = vmatpush1.msra.mxu0 0.0
        %686 = vmatprep.subr.mxu0 0.0
        %687 = vmatpush1.msra.mxu0 0.0
        %688 = vmatprep.subr.mxu0 0.0
        %689 = vmatpush1.msra.mxu0 0.0
        %690 = vmatprep.subr.mxu0 0.0
        %691 = vmatpush1.msra.mxu0 0.0
        %692 = vmatprep.subr.mxu0 0.0
        %693 = vmatpush1.msra.mxu0 0.0
        %694 = vmatprep.subr.mxu0 0.0
        %695 = vmatpush1.msra.mxu0 %v652
        %696 = vmatprep.subr.mxu0 0.0
        %697 = vmatpush1.msra.mxu0 %v651
        %698 = vmatprep.subr.mxu0 0.0
        %699 = vmatpush1.msra.mxu0 %v650
        %700 = vmatprep.subr.mxu0 0.0
        %701 = vmatpush1.msra.mxu0 %v649
        %702 = vmatprep.subr.mxu0 0.0
        %703 = vmatpush2.msra.mxu0 0.0
        %704 = vmatprep.subr.mxu0 0.0
        %705 = vmatpush2.msra.mxu0 0.0
        %706 = vmatprep.subr.mxu0 0.0
        %707 = vmatpush2.msra.mxu0 0.0
        %708 = vmatprep.subr.mxu0 0.0
        %709 = vmatpush2.msra.mxu0 0.0
        %710 = vmatprep.subr.mxu0 0.0
        %711 = vmatpush2.msra.mxu0 0.0
        %712 = vmatprep.subr.mxu0 0.0
        %713 = vmatpush2.msra.mxu0 0.0
        %714 = vmatprep.subr.mxu0 0.0
        %715 = vmatpush2.msra.mxu0 0.0
        %716 = vmatprep.subr.mxu0 0.0
        %717 = vmatpush2.msra.mxu0 0.0
        %718 = vmatprep.subr.mxu0 0.0
        %719 = vmatpush2.msra.mxu0 0.0
        %720 = vmatprep.subr.mxu0 0.0
        %721 = vmatpush2.msra.mxu0 0.0
        %722 = vmatprep.subr.mxu0 0.0
        %723 = vmatpush2.msra.mxu0 0.0
        %724 = vmatprep.subr.mxu0 0.0
        %725 = vmatpush2.msra.mxu0 0.0
        %726 = vmatprep.subr.mxu0 0.0
        %727 = vmatpush2.msra.mxu0 0.0
        %728 = vmatprep.subr.mxu0 0.0
        %729 = vmatpush2.msra.mxu0 0.0
        %730 = vmatprep.subr.mxu0 0.0
        %731 = vmatpush2.msra.mxu0 0.0
        %732 = vmatprep.subr.mxu0 0.0
        %733 = vmatpush2.msra.mxu0 0.0
        %734 = vmatprep.mubr.f32.mxu0 0.0
        %735 = vmatmul.mubr.f32.gmra.mxu0 %v668
        %v736 = vpop.f32.mrf.mxu0
        %v737 = vadd.f32 %v665, %v736
        %v738 = vpop.f32.mrf.mxu0
        %739 = vdwg.mxu0
        %v740 = vmax.f32 %v737, 0.0
        %v742 = vlaneseq
        %v743 = vshrl.u32 %v742, 7
        %v744 = vsub.s32 0, %v743
        %v745 = vrot.slane %v660, %v744
        %vm747 = vcmask 392192
        %v749 = vsel %vm747, %v740, 0
        %751 = vmatprep.subr.mxu0 0.0
        %752 = vmatpush1.msra.mxu0 0.0
        %753 = vmatprep.subr.mxu0 0.0
        %754 = vmatpush1.msra.mxu0 0.0
        %755 = vmatprep.subr.mxu0 0.0
        %756 = vmatpush1.msra.mxu0 0.0
        %757 = vmatprep.subr.mxu0 0.0
        %758 = vmatpush1.msra.mxu0 0.0
        %759 = vmatprep.subr.mxu0 0.0
        %760 = vmatpush1.msra.mxu0 0.0
        %761 = vmatprep.subr.mxu0 0.0
        %762 = vmatpush1.msra.mxu0 0.0
        %763 = vmatprep.subr.mxu0 0.0
        %764 = vmatpush1.msra.mxu0 0.0
        %765 = vmatprep.subr.mxu0 0.0
        %766 = vmatpush1.msra.mxu0 0.0
        %767 = vmatprep.subr.mxu0 0.0
        %768 = vmatpush1.msra.mxu0 0.0
        %769 = vmatprep.subr.mxu0 0.0
        %770 = vmatpush1.msra.mxu0 0.0
        %771 = vmatprep.subr.mxu0 0.0
        %772 = vmatpush1.msra.mxu0 %v659
        %773 = vmatprep.subr.mxu0 0.0
        %774 = vmatpush1.msra.mxu0 %v658
        %775 = vmatprep.subr.mxu0 0.0
        %776 = vmatpush1.msra.mxu0 %v657
        %777 = vmatprep.subr.mxu0 0.0
        %778 = vmatpush1.msra.mxu0 %v656
        %779 = vmatprep.subr.mxu0 0.0
        %780 = vmatpush1.msra.mxu0 %v655
        %781 = vmatprep.subr.mxu0 0.0
        %782 = vmatpush1.msra.mxu0 %v654
        %783 = vmatprep.subr.mxu0 0.0
        %784 = vmatpush2.msra.mxu0 0.0
        %785 = vmatprep.subr.mxu0 0.0
        %786 = vmatpush2.msra.mxu0 0.0
        %787 = vmatprep.subr.mxu0 0.0
        %788 = vmatpush2.msra.mxu0 0.0
        %789 = vmatprep.subr.mxu0 0.0
        %790 = vmatpush2.msra.mxu0 0.0
        %791 = vmatprep.subr.mxu0 0.0
        %792 = vmatpush2.msra.mxu0 0.0
        %793 = vmatprep.subr.mxu0 0.0
        %794 = vmatpush2.msra.mxu0 0.0
        %795 = vmatprep.subr.mxu0 0.0
        %796 = vmatpush2.msra.mxu0 0.0
        %797 = vmatprep.subr.mxu0 0.0
        %798 = vmatpush2.msra.mxu0 0.0
        %799 = vmatprep.subr.mxu0 0.0
        %800 = vmatpush2.msra.mxu0 0.0
        %801 = vmatprep.subr.mxu0 0.0
        %802 = vmatpush2.msra.mxu0 0.0
        %803 = vmatprep.subr.mxu0 0.0
        %804 = vmatpush2.msra.mxu0 0.0
        %805 = vmatprep.subr.mxu0 0.0
        %806 = vmatpush2.msra.mxu0 0.0
        %807 = vmatprep.subr.mxu0 0.0
        %808 = vmatpush2.msra.mxu0 0.0
        %809 = vmatprep.subr.mxu0 0.0
        %810 = vmatpush2.msra.mxu0 0.0
        %811 = vmatprep.subr.mxu0 0.0
        %812 = vmatpush2.msra.mxu0 0.0
        %813 = vmatprep.subr.mxu0 0.0
        %814 = vmatpush2.msra.mxu0 0.0
        %815 = vmatprep.mubr.f32.mxu0 0.0
        %816 = vmatmul.mubr.f32.gmra.mxu0 %v749
        %v817 = vpop.f32.mrf.mxu0
        %v818 = vadd.f32 %v745, %v817
        %v819 = vpop.f32.mrf.mxu0
        %820 = vdwg.mxu0
        %v821 = vadd.f32 %v818, %v737
        %v822 = vld [vmem:[%s9] sm:$0xff]
        %v823 = vld [vmem:[%s9 + $0x8] sm:$0xff]
        %v824 = vld [vmem:[%s9 + $0x10] sm:$0xff]
        %v825 = vld [vmem:[%s9 + $0x18] sm:$0xff]
        %v826 = vld [vmem:[%s9 + $0x20] sm:$0xff]
        %v827 = vld [vmem:[%s9 + $0x28] sm:$0xff]
        %v828 = vld [vmem:[%s10] sm:$0x1]
        %v830 = vlaneseq
        %v831 = vshrl.u32 %v830, 7
        %v832 = vsub.s32 0, %v831
        %v833 = vrot.slane %v828, %v832
        %v836 = vsel %vm747, %v821, 0
        %838 = vmatprep.subr.mxu0 0.0
        %839 = vmatpush1.msra.mxu0 0.0
        %840 = vmatprep.subr.mxu0 0.0
        %841 = vmatpush1.msra.mxu0 0.0
        %842 = vmatprep.subr.mxu0 0.0
        %843 = vmatpush1.msra.mxu0 0.0
        %844 = vmatprep.subr.mxu0 0.0
        %845 = vmatpush1.msra.mxu0 0.0
        %846 = vmatprep.subr.mxu0 0.0
        %847 = vmatpush1.msra.mxu0 0.0
        %848 = vmatprep.subr.mxu0 0.0
        %849 = vmatpush1.msra.mxu0 0.0
        %850 = vmatprep.subr.mxu0 0.0
        %851 = vmatpush1.msra.mxu0 0.0
        %852 = vmatprep.subr.mxu0 0.0
        %853 = vmatpush1.msra.mxu0 0.0
        %854 = vmatprep.subr.mxu0 0.0
        %855 = vmatpush1.msra.mxu0 0.0
        %856 = vmatprep.subr.mxu0 0.0
        %857 = vmatpush1.msra.mxu0 0.0
        %858 = vmatprep.subr.mxu0 0.0
        %859 = vmatpush1.msra.mxu0 %v827
        %860 = vmatprep.subr.mxu0 0.0
        %861 = vmatpush1.msra.mxu0 %v826
        %862 = vmatprep.subr.mxu0 0.0
        %863 = vmatpush1.msra.mxu0 %v825
        %864 = vmatprep.subr.mxu0 0.0
        %865 = vmatpush1.msra.mxu0 %v824
        %866 = vmatprep.subr.mxu0 0.0
        %867 = vmatpush1.msra.mxu0 %v823
        %868 = vmatprep.subr.mxu0 0.0
        %869 = vmatpush1.msra.mxu0 %v822
        %870 = vmatprep.subr.mxu0 0.0
        %871 = vmatpush2.msra.mxu0 0.0
        %872 = vmatprep.subr.mxu0 0.0
        %873 = vmatpush2.msra.mxu0 0.0
        %874 = vmatprep.subr.mxu0 0.0
        %875 = vmatpush2.msra.mxu0 0.0
        %876 = vmatprep.subr.mxu0 0.0
        %877 = vmatpush2.msra.mxu0 0.0
        %878 = vmatprep.subr.mxu0 0.0
        %879 = vmatpush2.msra.mxu0 0.0
        %880 = vmatprep.subr.mxu0 0.0
        %881 = vmatpush2.msra.mxu0 0.0
        %882 = vmatprep.subr.mxu0 0.0
        %883 = vmatpush2.msra.mxu0 0.0
        %884 = vmatprep.subr.mxu0 0.0
        %885 = vmatpush2.msra.mxu0 0.0
        %886 = vmatprep.subr.mxu0 0.0
        %887 = vmatpush2.msra.mxu0 0.0
        %888 = vmatprep.subr.mxu0 0.0
        %889 = vmatpush2.msra.mxu0 0.0
        %890 = vmatprep.subr.mxu0 0.0
        %891 = vmatpush2.msra.mxu0 0.0
        %892 = vmatprep.subr.mxu0 0.0
        %893 = vmatpush2.msra.mxu0 0.0
        %894 = vmatprep.subr.mxu0 0.0
        %895 = vmatpush2.msra.mxu0 0.0
        %896 = vmatprep.subr.mxu0 0.0
        %897 = vmatpush2.msra.mxu0 0.0
        %898 = vmatprep.subr.mxu0 0.0
        %899 = vmatpush2.msra.mxu0 0.0
        %900 = vmatprep.subr.mxu0 0.0
        %901 = vmatpush2.msra.mxu0 0.0
        %902 = vmatprep.mubr.f32.mxu0 0.0
        %903 = vmatmul.mubr.f32.gmra.mxu0 %v836
        %v904 = vpop.f32.mrf.mxu0
        %v905 = vadd.f32 %v833, %v904
        %v906 = vpop.f32.mrf.mxu0
        %907 = vdwg.mxu0
        %vm908 = vcmask 130048
        %909 = vst.msk [vmem:[%s471] sm:$0xff] %vm908, %v905
        %s910 = sand.u32 %s273, 1
        %s911 = scalar_lea.sflag [#allocation4], %s910
        %s912 = sand.u32 %s273, 1
        %s913 = smul.addr %s912, 8
        %s914 = scalar_lea.vmem [#allocation14], %s913
        // Predicated region
        $region93: #{tpu_custom_call.1} parent=63 // pred_check
          %p915 = pneg %p283
        $region94: #{tpu_custom_call.1} parent=63 // pred_check_branch
          %917 = sbr.rel (%p915) target = $region96
        $region95: #{tpu_custom_call.1} parent=63 // pred_region
          %s919 = ssub.s32 128, 128
          %920 = vsyncadd %s911, %s919
          %s921 = smul.addr %s29, 128
          %s922 = scalar_lea.hbm %s11, %s921
          %s924 = sshll.u32 %s914, 4
          %s925 = int_to_ptr.vmem [resolvable:$true] %s924
          %927 = dma.vmem_to_hbm [thread:$0]  %s925, 128, %s922, %s911
        $region96: #{tpu_custom_call.1} parent=63 // pred_fallthru
          _
      $region64: #{tpu_custom_call.1} parent=5 // pred_fallthru
        _
      %p928 = scmp.le.s32.totalorder 2, %s24
      // Predicated region
      $region97: #{tpu_custom_call.1} parent=5 // pred_check
        %p929 = pneg %p928
      $region98: #{tpu_custom_call.1} parent=5 // pred_check_branch
        %931 = sbr.rel (%p929) target = $region100
      $region99: #{tpu_custom_call.1} parent=5 // pred_region
        %s932 = ssub.s32 %s24, 2
        // Predicated region
        $region101: #{tpu_custom_call.1} parent=99 // pred_check
          %p933 = pneg %p289
        $region102: #{tpu_custom_call.1} parent=99 // pred_check_branch
          %935 = sbr.rel (%p933) target = $region104
        $region103: #{tpu_custom_call.1} parent=99 // pred_region
          %s936 = sand.u32 %s274, 1
          %s937 = scalar_lea.sflag [#allocation4], %s936
          %s938 = sand.u32 %s274, 1
          %s939 = smul.addr %s938, 8
          %s940 = scalar_lea.vmem [#allocation14], %s939
          %941 = dma.done %s937, 128
        $region104: #{tpu_custom_call.1} parent=99 // pred_fallthru
          _
      $region100: #{tpu_custom_call.1} parent=5 // pred_fallthru
        _
    $region6: #{tpu_custom_call.1} parent=1 // loop_footer
      %s28 = sadd.s32 1, %s24
    $region7: #{tpu_custom_call.1} parent=1 // loop_footer_branch
      %23 = sbr.rel target = $region3
    $region8: #{tpu_custom_call.1} parent=1 // loop_exit
      _
    %942 = vsyncpa [#allocation3], 1
    %s943 = scalar_lea.sflag [#allocation3], 1
    %944 = vsyncpa %s943, 1
    %945 = vsyncpa [#allocation6], 1
    %946 = vsyncpa [#allocation9], 1
    %947 = vsyncpa [#allocation12], 1
    %948 = vsyncpa [#allocation4], 1
    %s949 = scalar_lea.sflag [#allocation4], 1
    %950 = vsyncpa %s949, 1

</llo_original>
